<compile_context>
chip_gen: v5e
topology: v5e:2x2
jax: 0.10.0
libtpu: 0.0.40
codegen_flags: <defaults>
</compile_context>

<pallas_src>
import functools

import jax
import jax.numpy as jnp
import numpy as np
from jax.experimental import pallas as pl
from jax.experimental.pallas import tpu as pltpu


def _self_attention_kernel(q_ref, kv_ref, o_ref, *, scale, normalize,
                           use_residual):
    # q_ref : (Bt, Tq, C) query-token tile (channels on the lane axis).
    # kv_ref: (Bt, N,  C) full key/value tokens for the same batch tile.
    q = q_ref[...].astype(jnp.float32)                       # (Bt, Tq, C)
    kv = kv_ref[...].astype(jnp.float32)                     # (Bt, N,  C)

    qn, kn = q, kv
    if normalize:
        # F.normalize(x, p=2, dim=channels): x / max(||x||, 1e-12)
        #   == x * rsqrt(max(||x||^2, 1e-24))   (rsqrt lands on the EUP slot)
        qn = q * jax.lax.rsqrt(
            jnp.maximum(jnp.sum(q * q, axis=-1, keepdims=True), 1e-24))
        kn = kv * jax.lax.rsqrt(
            jnp.maximum(jnp.sum(kv * kv, axis=-1, keepdims=True), 1e-24))

    # bf16 operands, f32 accumulation: single MXU pass per matmul.
    q_bf = qn.astype(jnp.bfloat16)
    kn_s = kn * scale if scale != 1.0 else kn   # fold matmul_norm into operand
    k_bf = kn_s.astype(jnp.bfloat16)

    # logits[b, q, k] == affinity[b, k, q] = sum_c key[b,c,k] * query[b,c,q]
    logits = jnp.einsum("bqc,bkc->bqk", q_bf, k_bf,
                        preferred_element_type=jnp.float32)  # (Bt, Tq, N) f32

    # Softmax over the key index (== PyTorch softmax(dim=1) on (B, Nk, Nq)).
    # Statistics stay in f32; normalization is deferred past the next matmul.
    m = jnp.max(logits, axis=-1, keepdims=True)
    e = jnp.exp(logits - m)                                   # (Bt, Tq, N) f32
    denom = jnp.sum(e, axis=-1, keepdims=True)                # (Bt, Tq, 1)

    # out[b, q, c] = (sum_k e[b,q,k] * value[b,k,c]) / denom[b,q]
    out = jnp.einsum("bqk,bkc->bqc", e.astype(jnp.bfloat16),
                     kv.astype(jnp.bfloat16),
                     preferred_element_type=jnp.float32)      # (Bt, Tq, C) f32
    out = out * (1.0 / denom)                                 # exact, O(Bt*Tq)

    if use_residual:
        out = out + q
    o_ref[...] = out.astype(o_ref.dtype)


def _per_step_vmem_bytes(bt, tq, n, c):
    """Rough per-grid-step VMEM footprint (bytes) for tile sizes (bt, tq)."""
    io = 2 * bt * (2 * tq + n) * c * 4        # double-buffered q-in/out + kv f32 blocks
    mats = bt * tq * n * 10                   # f32 logits + f32 exp + bf16 exp
    vecs = bt * (tq + n) * c * 10             # f32/bf16 temporaries of q, kv, out
    return io + mats + vecs


def _vmem_capacity_bytes():
    try:
        cap = getattr(pltpu.get_tpu_info(), "vmem_capacity_bytes", None)
        if cap:
            return int(cap)
    except Exception:
        pass
    return 64 * 1024 * 1024                   # conservative (v7x per-TC size)


def _choose_tiles(B, N, C, vmem_budget):
    """Pick (Bt, Tq): the largest tiles fitting the VMEM budget.

    Prefer large Tq first (each query tile re-reads the full KV block, so a
    larger Tq means less HBM traffic), then large Bt.  Keep the grid length
    >= 2 whenever B > 1 so grid-level pipelining / v7x dual-TensorCore
    sharding can happen (shrink the batch tile, which is free, to get there).
    """
    tq_cands = [N] + [t for t in (4096, 2048, 1024, 512, 256, 128, 64, 32, 16, 8)
                      if t < N and N % t == 0]
    bt_cands = [b for b in range(min(B, 8), 0, -1) if B % b == 0]
    for tq in tq_cands:
        for bt in bt_cands:
            if _per_step_vmem_bytes(bt, tq, N, C) > vmem_budget:
                continue
            if (B // bt) * (N // tq) < 2 and bt > 1:
                continue                      # shrink Bt first to reach grid >= 2
            return bt, tq
    return 1, tq_cands[-1]                    # best effort for very large shapes


def self_attention(x, *, use_residual=True, normalize=False, matmul_norm=False):
    """x: (B, C, H, W) float32.  Returns (B, C, H, W)."""
    # TODO(synk): the optional ConvModule stack (num_convs>0), MaxPool3d
    # downsample and training-mode dropout are disabled in the default config
    # and are not implemented in the kernel.
    B, C, H, W = x.shape
    N = H * W

    # Glue: NCHW -> token-major (B, N, C) so channels sit on the lane axis.
    x_tok = jnp.transpose(x.reshape(B, C, N), (0, 2, 1)).astype(jnp.float32)

    vmem_cap = _vmem_capacity_bytes()
    Bt, Tq = _choose_tiles(B, N, C, vmem_budget=vmem_cap // 3)
    need = _per_step_vmem_bytes(Bt, Tq, N, C)
    vmem_limit = int(min(vmem_cap * 3 // 4, max(32 * 1024 * 1024, 2 * need)))

    scale = float(C) ** -0.5 if matmul_norm else 1.0
    kernel = functools.partial(_self_attention_kernel, scale=scale,
                               normalize=normalize, use_residual=use_residual)

    out_tok = pl.pallas_call(
        kernel,
        out_shape=jax.ShapeDtypeStruct((B, N, C), jnp.float32),
        grid_spec=pltpu.PrefetchScalarGridSpec(
            num_scalar_prefetch=0,
            grid=(B // Bt, N // Tq),
            in_specs=[
                pl.BlockSpec((Bt, Tq, C), lambda b, q: (b, q, 0)),   # query tile
                pl.BlockSpec((Bt, N, C), lambda b, q: (b, 0, 0)),    # full key/value
            ],
            out_specs=pl.BlockSpec((Bt, Tq, C), lambda b, q: (b, q, 0)),
        ),
        compiler_params=pltpu.CompilerParams(
            dimension_semantics=("parallel", "parallel"),
            vmem_limit_bytes=vmem_limit),
    )(x_tok, x_tok)

    return jnp.transpose(out_tok, (0, 2, 1)).reshape(B, C, H, W)


def reference(x, *, use_residual=True, normalize=False, matmul_norm=False):
    """Pure-JAX replica of the PyTorch forward (default config)."""
    B, C, H, W = x.shape
    q = x.reshape(B, C, H * W)
    k = q
    v = q
    if normalize:
        q = q / jnp.maximum(jnp.linalg.norm(q, axis=1, keepdims=True), 1e-12)
        k = k / jnp.maximum(jnp.linalg.norm(k, axis=1, keepdims=True), 1e-12)
    hi = jax.lax.Precision.HIGHEST
    affinity = jnp.einsum("bci,bcj->bij", k, q, precision=hi)   # (B, Nk, Nq)
    if matmul_norm:
        affinity = affinity * (float(C) ** -0.5)
    affinity = jax.nn.softmax(affinity, axis=1)                 # over keys i
    out = jnp.einsum("bci,bij->bcj", v, affinity, precision=hi)
    out = out.reshape(B, C, H, W)
    if use_residual:
        out = out + x
    return out


if __name__ == "__main__":
    # Small, TPU-friendly shapes: B=2, C=128 channels (lane-dense),
    # 16x16 spatial -> N=256 tokens.  Tile selection gives Bt=1, Tq=256
    # -> grid=(2, 1), so both pipeline stages / both v7x TensorCores get work.
    B, C, H, W = 2, 128, 16, 16
    key = jax.random.PRNGKey(0)
    x = 0.2 * jax.random.normal(key, (B, C, H, W), jnp.float32)

    out = jax.block_until_ready(self_attention(x))
    ref = jax.block_until_ready(reference(x))

    # bf16 MXU operands (f32 accumulation) vs. an f32 HIGHEST reference:
    # 1e-2 tolerance leaves comfortable margin over the observed ~1e-3 error.
    np.testing.assert_allclose(np.asarray(out), np.asarray(ref),
                               rtol=1e-2, atol=1e-2)
    assert out.shape == (B, C, H, W)
    print("KERNEL_OK")
</pallas_src>

<mosaic_0001>
module attributes {stable_mosaic.version = 11 : i64} {
  func.func @_self_attention_kernel(%arg0: i32, %arg1: i32, %arg2: memref<1x256x128xf32, #tpu.memory_space<vmem>>, %arg3: memref<1x256x128xf32, #tpu.memory_space<vmem>>, %arg4: memref<1x256x128xf32, #tpu.memory_space<vmem>>) attributes {dimension_semantics = [#tpu.dimension_semantics<parallel>, #tpu.dimension_semantics<parallel>], iteration_bounds = array<i64: 2, 1>, scalar_prefetch = 0 : i64, scratch_operands = 0 : i64, tpu.core_type = #tpu.core_type<tc>, window_params = [{transform_indices = @transform_0, window_bounds = array<i64: 1, 256, 128>}, {transform_indices = @transform_1, window_bounds = array<i64: 1, 256, 128>}, {transform_indices = @transform_2, window_bounds = array<i64: 1, 256, 128>}]} {
    %c0 = arith.constant 0 : index
    %c0_0 = arith.constant 0 : index
    %c0_1 = arith.constant 0 : index
    %0 = vector.load %arg2[%c0, %c0_0, %c0_1] : memref<1x256x128xf32, #tpu.memory_space<vmem>>, vector<1x256x128xf32>
    %c0_2 = arith.constant 0 : index
    %c0_3 = arith.constant 0 : index
    %c0_4 = arith.constant 0 : index
    %1 = vector.load %arg3[%c0_2, %c0_3, %c0_4] : memref<1x256x128xf32, #tpu.memory_space<vmem>>, vector<1x256x128xf32>
    %2 = arith.truncf %0 : vector<1x256x128xf32> to vector<1x256x128xbf16>
    %3 = arith.truncf %1 : vector<1x256x128xf32> to vector<1x256x128xbf16>
    "tpu.trace_start"() <{level = 10 : i32, message = "bqc,bkc->bqk"}> : () -> ()
    %cst = arith.constant dense<0.000000e+00> : vector<1x256x256xf32>
    %4 = tpu.matmul %2, %3, %cst {dimension_numbers = #tpu.dot_dimension_numbers<[2], [2], [1], [1], [0, 0, 0, 1, 1, 1], [0], [0]>} : vector<1x256x128xbf16>, vector<1x256x128xbf16>, vector<1x256x256xf32> -> vector<1x256x256xf32>
    "tpu.trace_stop"() : () -> ()
    %cst_5 = arith.constant dense<0xFF800000> : vector<1x256xf32>
    %5 = vector.multi_reduction <maximumf>, %4, %cst_5 [2] : vector<1x256x256xf32> to vector<1x256xf32>
    %6 = vector.shape_cast %5 : vector<1x256xf32> to vector<1x256x1xf32>
    %7 = vector.broadcast %6 : vector<1x256x1xf32> to vector<1x256x256xf32>
    %8 = arith.subf %4, %7 : vector<1x256x256xf32>
    %9 = math.exp %8 : vector<1x256x256xf32>
    %cst_6 = arith.constant dense<0.000000e+00> : vector<1x256xf32>
    %10 = vector.multi_reduction <add>, %9, %cst_6 [2] : vector<1x256x256xf32> to vector<1x256xf32>
    %11 = vector.shape_cast %10 : vector<1x256xf32> to vector<1x256x1xf32>
    %12 = arith.truncf %9 : vector<1x256x256xf32> to vector<1x256x256xbf16>
    %13 = arith.truncf %1 : vector<1x256x128xf32> to vector<1x256x128xbf16>
    "tpu.trace_start"() <{level = 10 : i32, message = "bqk,bkc->bqc"}> : () -> ()
    %cst_7 = arith.constant dense<0.000000e+00> : vector<1x256x128xf32>
    %14 = tpu.matmul %12, %13, %cst_7 {dimension_numbers = #tpu.dot_dimension_numbers<[2], [1], [1], [2], [0, 0, 0, 1, 1, 2], [0], [0]>} : vector<1x256x256xbf16>, vector<1x256x128xbf16>, vector<1x256x128xf32> -> vector<1x256x128xf32>
    "tpu.trace_stop"() : () -> ()
    %cst_8 = arith.constant 1.000000e+00 : f32
    %15 = vector.broadcast %cst_8 : f32 to vector<1x256x1xf32>
    %16 = arith.divf %15, %11 : vector<1x256x1xf32>
    %17 = vector.broadcast %16 : vector<1x256x1xf32> to vector<1x256x128xf32>
    %18 = arith.mulf %14, %17 : vector<1x256x128xf32>
    %19 = arith.addf %18, %0 : vector<1x256x128xf32>
    %c0_9 = arith.constant 0 : index
    %c0_10 = arith.constant 0 : index
    %c0_11 = arith.constant 0 : index
    %20 = vector.load %arg4[%c0_9, %c0_10, %c0_11] : memref<1x256x128xf32, #tpu.memory_space<vmem>>, vector<1x256x128xf32>
    tpu.vector_store %arg4[%c0_9, %c0_10, %c0_11], %19 {strides = array<i32>} : memref<1x256x128xf32, #tpu.memory_space<vmem>>, vector<1x256x128xf32>,
    return
  }
  func.func @transform_0(%arg0: i32, %arg1: i32) -> (i32, i32, i32) {
    %c0_i32 = arith.constant 0 : i32
    %c0_i32_0 = arith.constant 0 : i32
    return %arg0, %arg1, %c0_i32 : i32, i32, i32
  }
  func.func @transform_1(%arg0: i32, %arg1: i32) -> (i32, i32, i32) {
    %c0_i32 = arith.constant 0 : i32
    %c0_i32_0 = arith.constant 0 : i32
    %c0_i32_1 = arith.constant 0 : i32
    return %arg0, %c0_i32, %c0_i32_0 : i32, i32, i32
  }
  func.func @transform_2(%arg0: i32, %arg1: i32) -> (i32, i32, i32) {
    %c0_i32 = arith.constant 0 : i32
    %c0_i32_0 = arith.constant 0 : i32
    return %arg0, %arg1, %c0_i32 : i32, i32, i32
  }
}

</mosaic_0001>

<llo_original>
// kernel: tpu_custom_call.1
$region0: #{tpu_custom_call.1}
  #allocation0 [shape = 'u32[]', space=smem, size = 0x4, offset = 0x4, fixed_abs, tag = 'smem constant byte address 0x4 - core index']
  #allocation1 [shape = 'u32[72,128]{1,0:T(1,128)}', space=vmem, size = 0x9000, scoped, tag = 'internal scratch']
  %s0 = inlined_call_operand.hbm [shape: f32[2,256,128], index: 0, kind: input, shape index: {}]
  %s1 = inlined_call_operand.hbm [shape: f32[2,256,128], index: 1, kind: input, shape index: {}]
  %s2 = inlined_call_operand.hbm [shape: f32[2,256,128], index: 2, kind: output, shape index: {}]
  %s3 = sld [smem:[#allocation0]]
  $region49: #{tpu_custom_call.1} parent=0
    _
  %s5 = ssub.s32 1, %s3
  %s6 = scalar_select 0, %s5, %s3
  $region1: #{tpu_custom_call.1} parent=0
    #allocation2 [shape = 'u8[262144]{0}', space=vmem, size = 0x40000, scoped, tag = 'input window, operand 0']
    #allocation3 [shape = 's32[2]{0}', space=sflag, size = 0x8, scoped, tag = 'scoped memory for tpu_custom_call.1']
    #allocation4 [shape = 's32[2]{0}', space=sflag, size = 0x8, scoped, tag = 'scoped memory for tpu_custom_call.1']
    #allocation5 [shape = 'u8[262144]{0}', space=vmem, size = 0x40000, scoped, tag = 'input window, operand 1']
    #allocation6 [shape = 's32[2]{0}', space=sflag, size = 0x8, scoped, tag = 'scoped memory for tpu_custom_call.1']
    #allocation7 [shape = 'u8[262144]{0}', space=vmem, size = 0x40000, scoped, tag = 'output window, operand 0']
    %7 = vsyncpa [#allocation3], 0
    %s8 = scalar_lea.sflag [#allocation3], 1
    %9 = vsyncpa %s8, 0
    %10 = vsyncpa [#allocation6], 0
    %s11 = scalar_lea.sflag [#allocation6], 1
    %12 = vsyncpa %s11, 0
    %13 = vsyncpa [#allocation4], 0
    %s14 = scalar_lea.sflag [#allocation4], 1
    %15 = vsyncpa %s14, 0
    loop: start=0, step=1, limit=4
    $region2: #{tpu_custom_call.1} parent=1 // loop_pre_header
      _
    $region3: #{tpu_custom_call.1} parent=1 // loop_header
      %s17 = sphi 0, %s21
      %p18 = scmp.ge.s32.totalorder %s17, 4
      %s24 = sphi 0, %s36
      %s25 = sphi 0, %s32
      %s26 = sphi 0, %s24
      %s27 = sphi 0, %s25
      %s28 = sphi 0, %s26
      %s29 = sphi 0, %s27
      %s41 = sphi 0, %s43
      %s44 = sphi 0, %s41
      %s45 = sphi 0, %s44
      %s61 = sphi 0, %s45
      %s67 = sphi 0, %s69
      %s70 = sphi 0, %s67
      %s71 = sphi 0, %s70
      %s87 = sphi 0, %s71
      %s95 = sphi 0, %s97
      %s98 = sphi 0, %s95
      %s99 = sphi 0, %s98
      %s115 = sphi 0, %s99
    $region4: #{tpu_custom_call.1} parent=1 // loop_header_branch
      %20 = sbr.rel (%p18) target = $region8
    $region5: #{tpu_custom_call.1} parent=1 // loop_body
      %s22 = ssub.s32 %s17, 1
      %s23 = ssub.s32 %s17, 2
      %s30 = sadd.s32 1, %s25
      %p31 = scmp.ge.s32.totalorder %s30, 1
      %s32 = scalar_select %p31, 0, %s30
      %s33 = sadd.s32 1, %s24
      %s34 = scalar_select %p31, %s33, %s24
      %p35 = scmp.ge.s32.totalorder %s34, 2
      %s36 = scalar_select %p35, 0, %s34
      %s37 = ssub.s32 %s24, %s36
      %s38 = ssub.s32 %s25, %s32
      %s39 = sor.u32 %s37, %s38
      %p40 = scmp.eq.s32.totalorder %s39, 0
      %s42 = sadd.s32 %s41, 1
      %s43 = scalar_select %p40, %s41, %s42
      %p46 = pneg %p40
      %p47 = scmp.eq.s32.totalorder %s17, 1
      %p48 = por %p46, %p47
      %p49 = scmp.ne.s32.totalorder %s41, %s44
      %p50 = scmp.eq.s32.totalorder %s17, 0
      %p51 = por %p49, %p50
      %p52 = scmp.ne.s32.totalorder %s41, %s44
      %p53 = scmp.eq.s32.totalorder %s22, 1
      %p54 = por %p52, %p53
      %p55 = scmp.ne.s32.totalorder %s44, %s45
      %p56 = scmp.eq.s32.totalorder %s22, 0
      %p57 = por %p55, %p56
      %p58 = scmp.ne.s32.totalorder %s44, %s45
      %p59 = scmp.eq.s32.totalorder %s23, 1
      %p60 = por %p58, %p59
      %p62 = scmp.ne.s32.totalorder %s45, %s61
      %p63 = scmp.eq.s32.totalorder %s23, 0
      %p64 = por %p62, %p63
      %s65 = ssub.s32 %s24, %s36
      %p66 = scmp.eq.s32.totalorder %s65, 0
      %s68 = sadd.s32 %s67, 1
      %s69 = scalar_select %p66, %s67, %s68
      %p72 = pneg %p66
      %p73 = scmp.eq.s32.totalorder %s17, 1
      %p74 = por %p72, %p73
      %p75 = scmp.ne.s32.totalorder %s67, %s70
      %p76 = scmp.eq.s32.totalorder %s17, 0
      %p77 = por %p75, %p76
      %p78 = scmp.ne.s32.totalorder %s67, %s70
      %p79 = scmp.eq.s32.totalorder %s22, 1
      %p80 = por %p78, %p79
      %p81 = scmp.ne.s32.totalorder %s70, %s71
      %p82 = scmp.eq.s32.totalorder %s22, 0
      %p83 = por %p81, %p82
      %p84 = scmp.ne.s32.totalorder %s70, %s71
      %p85 = scmp.eq.s32.totalorder %s23, 1
      %p86 = por %p84, %p85
      %p88 = scmp.ne.s32.totalorder %s71, %s87
      %p89 = scmp.eq.s32.totalorder %s23, 0
      %p90 = por %p88, %p89
      %s91 = ssub.s32 %s24, %s36
      %s92 = ssub.s32 %s25, %s32
      %s93 = sor.u32 %s91, %s92
      %p94 = scmp.eq.s32.totalorder %s93, 0
      %s96 = sadd.s32 %s95, 1
      %s97 = scalar_select %p94, %s95, %s96
      %p100 = pneg %p94
      %p101 = scmp.eq.s32.totalorder %s17, 1
      %p102 = por %p100, %p101
      %p103 = scmp.ne.s32.totalorder %s95, %s98
      %p104 = scmp.eq.s32.totalorder %s17, 0
      %p105 = por %p103, %p104
      %p106 = scmp.ne.s32.totalorder %s95, %s98
      %p107 = scmp.eq.s32.totalorder %s22, 1
      %p108 = por %p106, %p107
      %p109 = scmp.ne.s32.totalorder %s98, %s99
      %p110 = scmp.eq.s32.totalorder %s22, 0
      %p111 = por %p109, %p110
      %p112 = scmp.ne.s32.totalorder %s98, %s99
      %p113 = scmp.eq.s32.totalorder %s23, 1
      %p114 = por %p112, %p113
      %p116 = scmp.ne.s32.totalorder %s99, %s115
      %p117 = scmp.eq.s32.totalorder %s23, 0
      %p118 = por %p116, %p117
      %p119 = scmp.le.s32.totalorder 1, %s17
      %p120 = scmp.lt.s32.totalorder %s17, 3
      %p121 = pnand %p119, %p120
      %p122 = pneg %p121
      // Predicated region
      $region9: #{tpu_custom_call.1} parent=5 // pred_check
        _
      $region10: #{tpu_custom_call.1} parent=5 // pred_check_branch
        %124 = sbr.rel (%p121) target = $region12
      $region11: #{tpu_custom_call.1} parent=5 // pred_region
        %s125 = ssub.s32 %s17, 1
      $region12: #{tpu_custom_call.1} parent=5 // pred_fallthru
        _
      %p126 = scmp.lt.s32.totalorder %s17, 2
      // Predicated region
      $region13: #{tpu_custom_call.1} parent=5 // pred_check
        %p127 = pneg %p126
      $region14: #{tpu_custom_call.1} parent=5 // pred_check_branch
        %129 = sbr.rel (%p127) target = $region16
      $region15: #{tpu_custom_call.1} parent=5 // pred_region
        // Predicated region
        $region17: #{tpu_custom_call.1} parent=15 // pred_check
          %p130 = pneg %p51
        $region18: #{tpu_custom_call.1} parent=15 // pred_check_branch
          %132 = sbr.rel (%p130) target = $region20
        $region19: #{tpu_custom_call.1} parent=15 // pred_region
          %s133 = sand.u32 %s41, 1
          %s134 = scalar_lea.sflag [#allocation3], %s133
          %s135 = sand.u32 %s41, 1
          %s136 = smul.addr %s135, 256
          %s137 = scalar_lea.vmem [#allocation2], %s136
          %s138 = smul.u32 32, %s25
          %140 = vsyncadd %s134, 0
          %s141 = smul.addr %s24, 32
          %s142 = sadd.s32 %s138, %s141
          %s143 = smul.addr %s142, 8
          %s144 = scalar_lea.hbm %s0, %s143
          %s145 = sshll.u32 %s144, 4
          %s146 = int_to_ptr.hbm [resolvable:$true] %s145
          %s147 = sshll.u32 %s137, 4
          %s148 = int_to_ptr.vmem [resolvable:$true] %s147
          %153 = dma.hbm_to_vmem [thread:$0]  %s146, 4096, %s148, %s134, 128, 128, 8
        $region20: #{tpu_custom_call.1} parent=15 // pred_fallthru
          _
        // Predicated region
        $region21: #{tpu_custom_call.1} parent=15 // pred_check
          %p154 = pneg %p77
        $region22: #{tpu_custom_call.1} parent=15 // pred_check_branch
          %156 = sbr.rel (%p154) target = $region24
        $region23: #{tpu_custom_call.1} parent=15 // pred_region
          %s157 = sand.u32 %s67, 1
          %s158 = scalar_lea.sflag [#allocation6], %s157
          %s159 = sand.u32 %s67, 1
          %s160 = smul.addr %s159, 256
          %s161 = scalar_lea.vmem [#allocation5], %s160
          %163 = vsyncadd %s158, 0
          %s164 = smul.addr %s24, 32
          %s165 = smul.addr %s164, 8
          %s166 = scalar_lea.hbm %s1, %s165
          %s167 = sshll.u32 %s166, 4
          %s168 = int_to_ptr.hbm [resolvable:$true] %s167
          %s169 = sshll.u32 %s161, 4
          %s170 = int_to_ptr.vmem [resolvable:$true] %s169
          %175 = dma.hbm_to_vmem [thread:$0]  %s168, 4096, %s170, %s158, 128, 128, 8
        $region24: #{tpu_custom_call.1} parent=15 // pred_fallthru
          _
      $region16: #{tpu_custom_call.1} parent=5 // pred_fallthru
        _
      %p176 = scmp.le.s32.totalorder 1, %s17
      %p177 = scmp.lt.s32.totalorder %s17, 3
      %p178 = pnand %p176, %p177
      %p179 = pneg %p178
      // Predicated region
      $region25: #{tpu_custom_call.1} parent=5 // pred_check
        _
      $region26: #{tpu_custom_call.1} parent=5 // pred_check_branch
        %181 = sbr.rel (%p178) target = $region28
      $region27: #{tpu_custom_call.1} parent=5 // pred_region
        %s182 = ssub.s32 %s17, 1
        %s183 = sand.u32 %s44, 1
        %s184 = scalar_lea.sflag [#allocation3], %s183
        %s185 = sand.u32 %s44, 1
        %s186 = smul.addr %s185, 256
        %s187 = scalar_lea.vmem [#allocation2], %s186
        // Predicated region
        $region29: #{tpu_custom_call.1} parent=27 // pred_check
          %p188 = pneg %p57
        $region30: #{tpu_custom_call.1} parent=27 // pred_check_branch
          %190 = sbr.rel (%p188) target = $region32
        $region31: #{tpu_custom_call.1} parent=27 // pred_region
          %192 = dma.done %s184, 4096
        $region32: #{tpu_custom_call.1} parent=27 // pred_fallthru
          _
        %s193 = sand.u32 %s70, 1
        %s194 = scalar_lea.sflag [#allocation6], %s193
        %s195 = sand.u32 %s70, 1
        %s196 = smul.addr %s195, 256
        %s197 = scalar_lea.vmem [#allocation5], %s196
        // Predicated region
        $region33: #{tpu_custom_call.1} parent=27 // pred_check
          %p198 = pneg %p83
        $region34: #{tpu_custom_call.1} parent=27 // pred_check_branch
          %200 = sbr.rel (%p198) target = $region36
        $region35: #{tpu_custom_call.1} parent=27 // pred_region
          %202 = dma.done %s194, 4096
        $region36: #{tpu_custom_call.1} parent=27 // pred_fallthru
          _
        %s203 = sand.u32 %s44, 1
        %s204 = scalar_lea.sflag [#allocation3], %s203
        %s205 = sand.u32 %s44, 1
        %s206 = smul.addr %s205, 256
        %s207 = scalar_lea.vmem [#allocation2], %s206
        %p208 = pneg %p57
        %p209 = pneg %p54
        %s210 = sand.u32 %s70, 1
        %s211 = scalar_lea.sflag [#allocation6], %s210
        %s212 = sand.u32 %s70, 1
        %s213 = smul.addr %s212, 256
        %s214 = scalar_lea.vmem [#allocation5], %s213
        %p215 = pneg %p83
        %p216 = pneg %p80
        %p217 = pneg %p111
        %p218 = pneg %p108
        %s219 = sand.u32 %s98, 1
        %s220 = scalar_lea.sflag [#allocation4], %s219
        %s221 = sand.u32 %s98, 1
        %s222 = smul.addr %s221, 256
        %s223 = scalar_lea.vmem [#allocation7], %s222
        %s224 = smul.u32 32, %s27
        %s225 = smul.u32 32, %s27
        %v226 = vld [vmem:[%s187] sm:$0xff]
        %v227 = vld [vmem:[%s187 + $0x8] sm:$0xff]
        %v228 = vld [vmem:[%s187 + $0x10] sm:$0xff]
        %v229 = vld [vmem:[%s187 + $0x18] sm:$0xff]
        %v230 = vld [vmem:[%s187 + $0x20] sm:$0xff]
        %v231 = vld [vmem:[%s187 + $0x28] sm:$0xff]
        %v232 = vld [vmem:[%s187 + $0x30] sm:$0xff]
        %v233 = vld [vmem:[%s187 + $0x38] sm:$0xff]
        %v234 = vld [vmem:[%s187 + $0x40] sm:$0xff]
        %v235 = vld [vmem:[%s187 + $0x48] sm:$0xff]
        %v236 = vld [vmem:[%s187 + $0x50] sm:$0xff]
        %v237 = vld [vmem:[%s187 + $0x58] sm:$0xff]
        %v238 = vld [vmem:[%s187 + $0x60] sm:$0xff]
        %v239 = vld [vmem:[%s187 + $0x68] sm:$0xff]
        %v240 = vld [vmem:[%s187 + $0x70] sm:$0xff]
        %v241 = vld [vmem:[%s187 + $0x78] sm:$0xff]
        %v242 = vld [vmem:[%s187 + $0x80] sm:$0xff]
        %v243 = vld [vmem:[%s187 + $0x88] sm:$0xff]
        %v244 = vld [vmem:[%s187 + $0x90] sm:$0xff]
        %v245 = vld [vmem:[%s187 + $0x98] sm:$0xff]
        %v246 = vld [vmem:[%s187 + $0xa0] sm:$0xff]
        %v247 = vld [vmem:[%s187 + $0xa8] sm:$0xff]
        %v248 = vld [vmem:[%s187 + $0xb0] sm:$0xff]
        %v249 = vld [vmem:[%s187 + $0xb8] sm:$0xff]
        %v250 = vld [vmem:[%s187 + $0xc0] sm:$0xff]
        %v251 = vld [vmem:[%s187 + $0xc8] sm:$0xff]
        %v252 = vld [vmem:[%s187 + $0xd0] sm:$0xff]
        %v253 = vld [vmem:[%s187 + $0xd8] sm:$0xff]
        %v254 = vld [vmem:[%s187 + $0xe0] sm:$0xff]
        %v255 = vld [vmem:[%s187 + $0xe8] sm:$0xff]
        %v256 = vld [vmem:[%s187 + $0xf0] sm:$0xff]
        %v257 = vld [vmem:[%s187 + $0xf8] sm:$0xff]
        %v258 = vld [vmem:[%s197] sm:$0xff]
        %v259 = vld [vmem:[%s197 + $0x8] sm:$0xff]
        %v260 = vld [vmem:[%s197 + $0x10] sm:$0xff]
        %v261 = vld [vmem:[%s197 + $0x18] sm:$0xff]
        %v262 = vld [vmem:[%s197 + $0x20] sm:$0xff]
        %v263 = vld [vmem:[%s197 + $0x28] sm:$0xff]
        %v264 = vld [vmem:[%s197 + $0x30] sm:$0xff]
        %v265 = vld [vmem:[%s197 + $0x38] sm:$0xff]
        %v266 = vld [vmem:[%s197 + $0x40] sm:$0xff]
        %v267 = vld [vmem:[%s197 + $0x48] sm:$0xff]
        %v268 = vld [vmem:[%s197 + $0x50] sm:$0xff]
        %v269 = vld [vmem:[%s197 + $0x58] sm:$0xff]
        %v270 = vld [vmem:[%s197 + $0x60] sm:$0xff]
        %v271 = vld [vmem:[%s197 + $0x68] sm:$0xff]
        %v272 = vld [vmem:[%s197 + $0x70] sm:$0xff]
        %v273 = vld [vmem:[%s197 + $0x78] sm:$0xff]
        %v274 = vld [vmem:[%s197 + $0x80] sm:$0xff]
        %v275 = vld [vmem:[%s197 + $0x88] sm:$0xff]
        %v276 = vld [vmem:[%s197 + $0x90] sm:$0xff]
        %v277 = vld [vmem:[%s197 + $0x98] sm:$0xff]
        %v278 = vld [vmem:[%s197 + $0xa0] sm:$0xff]
        %v279 = vld [vmem:[%s197 + $0xa8] sm:$0xff]
        %v280 = vld [vmem:[%s197 + $0xb0] sm:$0xff]
        %v281 = vld [vmem:[%s197 + $0xb8] sm:$0xff]
        %v282 = vld [vmem:[%s197 + $0xc0] sm:$0xff]
        %v283 = vld [vmem:[%s197 + $0xc8] sm:$0xff]
        %v284 = vld [vmem:[%s197 + $0xd0] sm:$0xff]
        %v285 = vld [vmem:[%s197 + $0xd8] sm:$0xff]
        %v286 = vld [vmem:[%s197 + $0xe0] sm:$0xff]
        %v287 = vld [vmem:[%s197 + $0xe8] sm:$0xff]
        %v288 = vld [vmem:[%s197 + $0xf0] sm:$0xff]
        %v289 = vld [vmem:[%s197 + $0xf8] sm:$0xff]
        %v290 = vpack.c.bf16 %v226, %v226
        %v291 = vpack.c.bf16 %v227, %v227
        %v292 = vpack.c.bf16 %v228, %v228
        %v293 = vpack.c.bf16 %v229, %v229
        %v294 = vpack.c.bf16 %v230, %v230
        %v295 = vpack.c.bf16 %v231, %v231
        %v296 = vpack.c.bf16 %v232, %v232
        %v297 = vpack.c.bf16 %v233, %v233
        %v298 = vpack.c.bf16 %v234, %v234
        %v299 = vpack.c.bf16 %v235, %v235
        %v300 = vpack.c.bf16 %v236, %v236
        %v301 = vpack.c.bf16 %v237, %v237
        %v302 = vpack.c.bf16 %v238, %v238
        %v303 = vpack.c.bf16 %v239, %v239
        %v304 = vpack.c.bf16 %v240, %v240
        %v305 = vpack.c.bf16 %v241, %v241
        %v306 = vpack.c.bf16 %v242, %v242
        %v307 = vpack.c.bf16 %v243, %v243
        %v308 = vpack.c.bf16 %v244, %v244
        %v309 = vpack.c.bf16 %v245, %v245
        %v310 = vpack.c.bf16 %v246, %v246
        %v311 = vpack.c.bf16 %v247, %v247
        %v312 = vpack.c.bf16 %v248, %v248
        %v313 = vpack.c.bf16 %v249, %v249
        %v314 = vpack.c.bf16 %v250, %v250
        %v315 = vpack.c.bf16 %v251, %v251
        %v316 = vpack.c.bf16 %v252, %v252
        %v317 = vpack.c.bf16 %v253, %v253
        %v318 = vpack.c.bf16 %v254, %v254
        %v319 = vpack.c.bf16 %v255, %v255
        %v320 = vpack.c.bf16 %v256, %v256
        %v321 = vpack.c.bf16 %v257, %v257
        %v322 = vpack.c.bf16 %v258, %v258
        %v323 = vpack.c.bf16 %v259, %v259
        %v324 = vpack.c.bf16 %v260, %v260
        %v325 = vpack.c.bf16 %v261, %v261
        %v326 = vpack.c.bf16 %v262, %v262
        %v327 = vpack.c.bf16 %v263, %v263
        %v328 = vpack.c.bf16 %v264, %v264
        %v329 = vpack.c.bf16 %v265, %v265
        %v330 = vpack.c.bf16 %v266, %v266
        %v331 = vpack.c.bf16 %v267, %v267
        %v332 = vpack.c.bf16 %v268, %v268
        %v333 = vpack.c.bf16 %v269, %v269
        %v334 = vpack.c.bf16 %v270, %v270
        %v335 = vpack.c.bf16 %v271, %v271
        %v336 = vpack.c.bf16 %v272, %v272
        %v337 = vpack.c.bf16 %v273, %v273
        %v338 = vpack.c.bf16 %v274, %v274
        %v339 = vpack.c.bf16 %v275, %v275
        %v340 = vpack.c.bf16 %v276, %v276
        %v341 = vpack.c.bf16 %v277, %v277
        %v342 = vpack.c.bf16 %v278, %v278
        %v343 = vpack.c.bf16 %v279, %v279
        %v344 = vpack.c.bf16 %v280, %v280
        %v345 = vpack.c.bf16 %v281, %v281
        %v346 = vpack.c.bf16 %v282, %v282
        %v347 = vpack.c.bf16 %v283, %v283
        %v348 = vpack.c.bf16 %v284, %v284
        %v349 = vpack.c.bf16 %v285, %v285
        %v350 = vpack.c.bf16 %v286, %v286
        %v351 = vpack.c.bf16 %v287, %v287
        %v352 = vpack.c.bf16 %v288, %v288
        %v353 = vpack.c.bf16 %v289, %v289
        %v386 = vunpack.c.l.b16 %v290
        %v387 = vunpack.c.l.b16 %v291
        %v388 = vunpack.c.l.b16 %v292
        %v389 = vunpack.c.l.b16 %v293
        %v390 = vunpack.c.l.b16 %v294
        %v391 = vunpack.c.l.b16 %v295
        %v392 = vunpack.c.l.b16 %v296
        %v393 = vunpack.c.l.b16 %v297
        %v394 = vunpack.c.l.b16 %v298
        %v395 = vunpack.c.l.b16 %v299
        %v396 = vunpack.c.l.b16 %v300
        %v397 = vunpack.c.l.b16 %v301
        %v398 = vunpack.c.l.b16 %v302
        %v399 = vunpack.c.l.b16 %v303
        %v400 = vunpack.c.l.b16 %v304
        %v401 = vunpack.c.l.b16 %v305
        %v402 = vunpack.c.l.b16 %v306
        %v403 = vunpack.c.l.b16 %v307
        %v404 = vunpack.c.l.b16 %v308
        %v405 = vunpack.c.l.b16 %v309
        %v406 = vunpack.c.l.b16 %v310
        %v407 = vunpack.c.l.b16 %v311
        %v408 = vunpack.c.l.b16 %v312
        %v409 = vunpack.c.l.b16 %v313
        %v410 = vunpack.c.l.b16 %v314
        %v411 = vunpack.c.l.b16 %v315
        %v412 = vunpack.c.l.b16 %v316
        %v413 = vunpack.c.l.b16 %v317
        %v414 = vunpack.c.l.b16 %v318
        %v415 = vunpack.c.l.b16 %v319
        %v416 = vunpack.c.l.b16 %v320
        %v417 = vunpack.c.l.b16 %v321
        %v418 = vpack.c.b16 %v387, %v386
        %v419 = vpack.c.b16 %v389, %v388
        %v420 = vpack.c.b16 %v391, %v390
        %v421 = vpack.c.b16 %v393, %v392
        %v422 = vpack.c.b16 %v395, %v394
        %v423 = vpack.c.b16 %v397, %v396
        %v424 = vpack.c.b16 %v399, %v398
        %v425 = vpack.c.b16 %v401, %v400
        %v426 = vpack.c.b16 %v403, %v402
        %v427 = vpack.c.b16 %v405, %v404
        %v428 = vpack.c.b16 %v407, %v406
        %v429 = vpack.c.b16 %v409, %v408
        %v430 = vpack.c.b16 %v411, %v410
        %v431 = vpack.c.b16 %v413, %v412
        %v432 = vpack.c.b16 %v415, %v414
        %v433 = vpack.c.b16 %v417, %v416
        %v482 = vunpack.c.l.b16 %v322
        %v483 = vunpack.c.l.b16 %v323
        %v484 = vunpack.c.l.b16 %v324
        %v485 = vunpack.c.l.b16 %v325
        %v486 = vunpack.c.l.b16 %v326
        %v487 = vunpack.c.l.b16 %v327
        %v488 = vunpack.c.l.b16 %v328
        %v489 = vunpack.c.l.b16 %v329
        %v490 = vunpack.c.l.b16 %v330
        %v491 = vunpack.c.l.b16 %v331
        %v492 = vunpack.c.l.b16 %v332
        %v493 = vunpack.c.l.b16 %v333
        %v494 = vunpack.c.l.b16 %v334
        %v495 = vunpack.c.l.b16 %v335
        %v496 = vunpack.c.l.b16 %v336
        %v497 = vunpack.c.l.b16 %v337
        %v498 = vunpack.c.l.b16 %v338
        %v499 = vunpack.c.l.b16 %v339
        %v500 = vunpack.c.l.b16 %v340
        %v501 = vunpack.c.l.b16 %v341
        %v502 = vunpack.c.l.b16 %v342
        %v503 = vunpack.c.l.b16 %v343
        %v504 = vunpack.c.l.b16 %v344
        %v505 = vunpack.c.l.b16 %v345
        %v506 = vunpack.c.l.b16 %v346
        %v507 = vunpack.c.l.b16 %v347
        %v508 = vunpack.c.l.b16 %v348
        %v509 = vunpack.c.l.b16 %v349
        %v510 = vunpack.c.l.b16 %v350
        %v511 = vunpack.c.l.b16 %v351
        %v512 = vunpack.c.l.b16 %v352
        %v513 = vunpack.c.l.b16 %v353
        %v514 = vpack.c.b16 %v483, %v482
        %v515 = vpack.c.b16 %v485, %v484
        %v516 = vpack.c.b16 %v487, %v486
        %v517 = vpack.c.b16 %v489, %v488
        %v518 = vpack.c.b16 %v491, %v490
        %v519 = vpack.c.b16 %v493, %v492
        %v520 = vpack.c.b16 %v495, %v494
        %v521 = vpack.c.b16 %v497, %v496
        %v522 = vpack.c.b16 %v499, %v498
        %v523 = vpack.c.b16 %v501, %v500
        %v524 = vpack.c.b16 %v503, %v502
        %v525 = vpack.c.b16 %v505, %v504
        %v526 = vpack.c.b16 %v507, %v506
        %v527 = vpack.c.b16 %v509, %v508
        %v528 = vpack.c.b16 %v511, %v510
        %v529 = vpack.c.b16 %v513, %v512
        %546 = vmatpush.bf16.xpose.msra.mxu0 %v521
        %547 = vmatpush.bf16.xpose.msra.mxu0 %v520
        %548 = vmatpush.bf16.xpose.msra.mxu0 %v519
        %549 = vmatpush.bf16.xpose.msra.mxu0 %v518
        %550 = vmatpush.bf16.xpose.msra.mxu0 %v517
        %551 = vmatpush.bf16.xpose.msra.mxu0 %v516
        %552 = vmatpush.bf16.xpose.msra.mxu0 %v515
        %553 = vmatpush.bf16.xpose.msra.mxu0 %v514
        %554 = vmatmul.bf16.gmra.mxu0 %v418
        %v555 = vpop.f32.mrf.mxu0
        %v556 = vadd.f32 0.0, %v555
        %v557 = vpop.f32.mrf.mxu0
        %v558 = vadd.f32 0.0, %v557
        %559 = vmatmul.bf16.gmra.mxu0 %v419
        %v560 = vpop.f32.mrf.mxu0
        %v561 = vadd.f32 0.0, %v560
        %v562 = vpop.f32.mrf.mxu0
        %v563 = vadd.f32 0.0, %v562
        %564 = vmatmul.bf16.gmra.mxu0 %v420
        %v565 = vpop.f32.mrf.mxu0
        %v566 = vadd.f32 0.0, %v565
        %v567 = vpop.f32.mrf.mxu0
        %v568 = vadd.f32 0.0, %v567
        %569 = vmatmul.bf16.gmra.mxu0 %v421
        %v570 = vpop.f32.mrf.mxu0
        %v571 = vadd.f32 0.0, %v570
        %v572 = vpop.f32.mrf.mxu0
        %v573 = vadd.f32 0.0, %v572
        %574 = vmatmul.bf16.gmra.mxu0 %v422
        %v575 = vpop.f32.mrf.mxu0
        %v576 = vadd.f32 0.0, %v575
        %v577 = vpop.f32.mrf.mxu0
        %v578 = vadd.f32 0.0, %v577
        %579 = vmatmul.bf16.gmra.mxu0 %v423
        %v580 = vpop.f32.mrf.mxu0
        %v581 = vadd.f32 0.0, %v580
        %v582 = vpop.f32.mrf.mxu0
        %v583 = vadd.f32 0.0, %v582
        %584 = vmatmul.bf16.gmra.mxu0 %v424
        %v585 = vpop.f32.mrf.mxu0
        %v586 = vadd.f32 0.0, %v585
        %v587 = vpop.f32.mrf.mxu0
        %v588 = vadd.f32 0.0, %v587
        %589 = vmatmul.bf16.gmra.mxu0 %v425
        %v590 = vpop.f32.mrf.mxu0
        %v591 = vadd.f32 0.0, %v590
        %v592 = vpop.f32.mrf.mxu0
        %v593 = vadd.f32 0.0, %v592
        %594 = vmatmul.bf16.gmra.mxu0 %v426
        %v595 = vpop.f32.mrf.mxu0
        %v596 = vadd.f32 0.0, %v595
        %v597 = vpop.f32.mrf.mxu0
        %v598 = vadd.f32 0.0, %v597
        %599 = vmatmul.bf16.gmra.mxu0 %v427
        %v600 = vpop.f32.mrf.mxu0
        %v601 = vadd.f32 0.0, %v600
        %v602 = vpop.f32.mrf.mxu0
        %v603 = vadd.f32 0.0, %v602
        %604 = vmatmul.bf16.gmra.mxu0 %v428
        %v605 = vpop.f32.mrf.mxu0
        %v606 = vadd.f32 0.0, %v605
        %v607 = vpop.f32.mrf.mxu0
        %v608 = vadd.f32 0.0, %v607
        %609 = vmatmul.bf16.gmra.mxu0 %v429
        %v610 = vpop.f32.mrf.mxu0
        %v611 = vadd.f32 0.0, %v610
        %v612 = vpop.f32.mrf.mxu0
        %v613 = vadd.f32 0.0, %v612
        %614 = vmatmul.bf16.gmra.mxu0 %v430
        %v615 = vpop.f32.mrf.mxu0
        %v616 = vadd.f32 0.0, %v615
        %v617 = vpop.f32.mrf.mxu0
        %v618 = vadd.f32 0.0, %v617
        %619 = vmatmul.bf16.gmra.mxu0 %v431
        %v620 = vpop.f32.mrf.mxu0
        %v621 = vadd.f32 0.0, %v620
        %v622 = vpop.f32.mrf.mxu0
        %v623 = vadd.f32 0.0, %v622
        %624 = vmatmul.bf16.gmra.mxu0 %v432
        %v625 = vpop.f32.mrf.mxu0
        %v626 = vadd.f32 0.0, %v625
        %v627 = vpop.f32.mrf.mxu0
        %v628 = vadd.f32 0.0, %v627
        %629 = vmatmul.bf16.gmra.mxu0 %v433
        %v630 = vpop.f32.mrf.mxu0
        %v631 = vadd.f32 0.0, %v630
        %v632 = vpop.f32.mrf.mxu0
        %v633 = vadd.f32 0.0, %v632
        %634 = vdwg.mxu0
        %635 = vmatpush.bf16.xpose.msra.mxu0 %v529
        %636 = vmatpush.bf16.xpose.msra.mxu0 %v528
        %637 = vmatpush.bf16.xpose.msra.mxu0 %v527
        %638 = vmatpush.bf16.xpose.msra.mxu0 %v526
        %639 = vmatpush.bf16.xpose.msra.mxu0 %v525
        %640 = vmatpush.bf16.xpose.msra.mxu0 %v524
        %641 = vmatpush.bf16.xpose.msra.mxu0 %v523
        %642 = vmatpush.bf16.xpose.msra.mxu0 %v522
        %643 = vmatmul.bf16.gmra.mxu0 %v418
        %v644 = vpop.f32.mrf.mxu0
        %v645 = vadd.f32 0.0, %v644
        %v646 = vpop.f32.mrf.mxu0
        %v647 = vadd.f32 0.0, %v646
        %648 = vmatmul.bf16.gmra.mxu0 %v419
        %v649 = vpop.f32.mrf.mxu0
        %v650 = vadd.f32 0.0, %v649
        %v651 = vpop.f32.mrf.mxu0
        %v652 = vadd.f32 0.0, %v651
        %653 = vmatmul.bf16.gmra.mxu0 %v420
        %v654 = vpop.f32.mrf.mxu0
        %v655 = vadd.f32 0.0, %v654
        %v656 = vpop.f32.mrf.mxu0
        %v657 = vadd.f32 0.0, %v656
        %658 = vmatmul.bf16.gmra.mxu0 %v421
        %v659 = vpop.f32.mrf.mxu0
        %v660 = vadd.f32 0.0, %v659
        %v661 = vpop.f32.mrf.mxu0
        %v662 = vadd.f32 0.0, %v661
        %663 = vmatmul.bf16.gmra.mxu0 %v422
        %v664 = vpop.f32.mrf.mxu0
        %v665 = vadd.f32 0.0, %v664
        %v666 = vpop.f32.mrf.mxu0
        %v667 = vadd.f32 0.0, %v666
        %668 = vmatmul.bf16.gmra.mxu0 %v423
        %v669 = vpop.f32.mrf.mxu0
        %v670 = vadd.f32 0.0, %v669
        %v671 = vpop.f32.mrf.mxu0
        %v672 = vadd.f32 0.0, %v671
        %673 = vmatmul.bf16.gmra.mxu0 %v424
        %v674 = vpop.f32.mrf.mxu0
        %v675 = vadd.f32 0.0, %v674
        %v676 = vpop.f32.mrf.mxu0
        %v677 = vadd.f32 0.0, %v676
        %678 = vmatmul.bf16.gmra.mxu0 %v425
        %v679 = vpop.f32.mrf.mxu0
        %v680 = vadd.f32 0.0, %v679
        %v681 = vpop.f32.mrf.mxu0
        %v682 = vadd.f32 0.0, %v681
        %683 = vmatmul.bf16.gmra.mxu0 %v426
        %v684 = vpop.f32.mrf.mxu0
        %v685 = vadd.f32 0.0, %v684
        %v686 = vpop.f32.mrf.mxu0
        %v687 = vadd.f32 0.0, %v686
        %688 = vmatmul.bf16.gmra.mxu0 %v427
        %v689 = vpop.f32.mrf.mxu0
        %v690 = vadd.f32 0.0, %v689
        %v691 = vpop.f32.mrf.mxu0
        %v692 = vadd.f32 0.0, %v691
        %693 = vmatmul.bf16.gmra.mxu0 %v428
        %v694 = vpop.f32.mrf.mxu0
        %v695 = vadd.f32 0.0, %v694
        %v696 = vpop.f32.mrf.mxu0
        %v697 = vadd.f32 0.0, %v696
        %698 = vmatmul.bf16.gmra.mxu0 %v429
        %v699 = vpop.f32.mrf.mxu0
        %v700 = vadd.f32 0.0, %v699
        %v701 = vpop.f32.mrf.mxu0
        %v702 = vadd.f32 0.0, %v701
        %703 = vmatmul.bf16.gmra.mxu0 %v430
        %v704 = vpop.f32.mrf.mxu0
        %v705 = vadd.f32 0.0, %v704
        %v706 = vpop.f32.mrf.mxu0
        %v707 = vadd.f32 0.0, %v706
        %708 = vmatmul.bf16.gmra.mxu0 %v431
        %v709 = vpop.f32.mrf.mxu0
        %v710 = vadd.f32 0.0, %v709
        %v711 = vpop.f32.mrf.mxu0
        %v712 = vadd.f32 0.0, %v711
        %713 = vmatmul.bf16.gmra.mxu0 %v432
        %v714 = vpop.f32.mrf.mxu0
        %v715 = vadd.f32 0.0, %v714
        %v716 = vpop.f32.mrf.mxu0
        %v717 = vadd.f32 0.0, %v716
        %718 = vmatmul.bf16.gmra.mxu0 %v433
        %v719 = vpop.f32.mrf.mxu0
        %v720 = vadd.f32 0.0, %v719
        %v721 = vpop.f32.mrf.mxu0
        %v722 = vadd.f32 0.0, %v721
        %723 = vdwg.mxu0
        %v724 = vmax.f32 %v556, %v645
        %725 = vmax.xlane.f32.xlu0 %v724
        %v726 = vpop.xlane.xlu0 %725
        %v727 = vmax.f32 %v558, %v647
        %728 = vmax.xlane.f32.xlu0 %v727
        %v729 = vpop.xlane.xlu0 %728
        %v730 = vmax.f32 %v561, %v650
        %731 = vmax.xlane.f32.xlu0 %v730
        %v732 = vpop.xlane.xlu0 %731
        %v733 = vmax.f32 %v563, %v652
        %734 = vmax.xlane.f32.xlu0 %v733
        %v735 = vpop.xlane.xlu0 %734
        %v736 = vmax.f32 %v566, %v655
        %737 = vmax.xlane.f32.xlu0 %v736
        %v738 = vpop.xlane.xlu0 %737
        %v739 = vmax.f32 %v568, %v657
        %740 = vmax.xlane.f32.xlu0 %v739
        %v741 = vpop.xlane.xlu0 %740
        %v742 = vmax.f32 %v571, %v660
        %743 = vmax.xlane.f32.xlu0 %v742
        %v744 = vpop.xlane.xlu0 %743
        %v745 = vmax.f32 %v573, %v662
        %746 = vmax.xlane.f32.xlu0 %v745
        %v747 = vpop.xlane.xlu0 %746
        %v748 = vmax.f32 %v576, %v665
        %749 = vmax.xlane.f32.xlu0 %v748
        %v750 = vpop.xlane.xlu0 %749
        %v751 = vmax.f32 %v578, %v667
        %752 = vmax.xlane.f32.xlu0 %v751
        %v753 = vpop.xlane.xlu0 %752
        %v754 = vmax.f32 %v581, %v670
        %755 = vmax.xlane.f32.xlu0 %v754
        %v756 = vpop.xlane.xlu0 %755
        %v757 = vmax.f32 %v583, %v672
        %758 = vmax.xlane.f32.xlu0 %v757
        %v759 = vpop.xlane.xlu0 %758
        %v760 = vmax.f32 %v586, %v675
        %761 = vmax.xlane.f32.xlu0 %v760
        %v762 = vpop.xlane.xlu0 %761
        %v763 = vmax.f32 %v588, %v677
        %764 = vmax.xlane.f32.xlu0 %v763
        %v765 = vpop.xlane.xlu0 %764
        %v766 = vmax.f32 %v591, %v680
        %767 = vmax.xlane.f32.xlu0 %v766
        %v768 = vpop.xlane.xlu0 %767
        %v769 = vmax.f32 %v593, %v682
        %770 = vmax.xlane.f32.xlu0 %v769
        %v771 = vpop.xlane.xlu0 %770
        %v772 = vmax.f32 %v596, %v685
        %773 = vmax.xlane.f32.xlu0 %v772
        %v774 = vpop.xlane.xlu0 %773
        %v775 = vmax.f32 %v598, %v687
        %776 = vmax.xlane.f32.xlu0 %v775
        %v777 = vpop.xlane.xlu0 %776
        %v778 = vmax.f32 %v601, %v690
        %779 = vmax.xlane.f32.xlu0 %v778
        %v780 = vpop.xlane.xlu0 %779
        %v781 = vmax.f32 %v603, %v692
        %782 = vmax.xlane.f32.xlu0 %v781
        %v783 = vpop.xlane.xlu0 %782
        %v784 = vmax.f32 %v606, %v695
        %785 = vmax.xlane.f32.xlu0 %v784
        %v786 = vpop.xlane.xlu0 %785
        %v787 = vmax.f32 %v608, %v697
        %788 = vmax.xlane.f32.xlu0 %v787
        %v789 = vpop.xlane.xlu0 %788
        %v790 = vmax.f32 %v611, %v700
        %791 = vmax.xlane.f32.xlu0 %v790
        %v792 = vpop.xlane.xlu0 %791
        %v793 = vmax.f32 %v613, %v702
        %794 = vmax.xlane.f32.xlu0 %v793
        %v795 = vpop.xlane.xlu0 %794
        %v796 = vmax.f32 %v616, %v705
        %797 = vmax.xlane.f32.xlu0 %v796
        %v798 = vpop.xlane.xlu0 %797
        %v799 = vmax.f32 %v618, %v707
        %800 = vmax.xlane.f32.xlu0 %v799
        %v801 = vpop.xlane.xlu0 %800
        %v802 = vmax.f32 %v621, %v710
        %803 = vmax.xlane.f32.xlu0 %v802
        %v804 = vpop.xlane.xlu0 %803
        %v805 = vmax.f32 %v623, %v712
        %806 = vmax.xlane.f32.xlu0 %v805
        %v807 = vpop.xlane.xlu0 %806
        %v808 = vmax.f32 %v626, %v715
        %809 = vmax.xlane.f32.xlu0 %v808
        %v810 = vpop.xlane.xlu0 %809
        %v811 = vmax.f32 %v628, %v717
        %812 = vmax.xlane.f32.xlu0 %v811
        %v813 = vpop.xlane.xlu0 %812
        %v814 = vmax.f32 %v631, %v720
        %815 = vmax.xlane.f32.xlu0 %v814
        %v816 = vpop.xlane.xlu0 %815
        %v817 = vmax.f32 %v633, %v722
        %818 = vmax.xlane.f32.xlu0 %v817
        %v819 = vpop.xlane.xlu0 %818
        %v820 = vsub.f32 %v556, %v726
        %v821 = vsub.f32 %v645, %v726
        %v822 = vsub.f32 %v558, %v729
        %v823 = vsub.f32 %v647, %v729
        %v824 = vsub.f32 %v561, %v732
        %v825 = vsub.f32 %v650, %v732
        %v826 = vsub.f32 %v563, %v735
        %v827 = vsub.f32 %v652, %v735
        %v828 = vsub.f32 %v566, %v738
        %v829 = vsub.f32 %v655, %v738
        %v830 = vsub.f32 %v568, %v741
        %v831 = vsub.f32 %v657, %v741
        %v832 = vsub.f32 %v571, %v744
        %v833 = vsub.f32 %v660, %v744
        %v834 = vsub.f32 %v573, %v747
        %v835 = vsub.f32 %v662, %v747
        %v836 = vsub.f32 %v576, %v750
        %v837 = vsub.f32 %v665, %v750
        %v838 = vsub.f32 %v578, %v753
        %v839 = vsub.f32 %v667, %v753
        %v840 = vsub.f32 %v581, %v756
        %v841 = vsub.f32 %v670, %v756
        %v842 = vsub.f32 %v583, %v759
        %v843 = vsub.f32 %v672, %v759
        %v844 = vsub.f32 %v586, %v762
        %v845 = vsub.f32 %v675, %v762
        %v846 = vsub.f32 %v588, %v765
        %v847 = vsub.f32 %v677, %v765
        %v848 = vsub.f32 %v591, %v768
        %v849 = vsub.f32 %v680, %v768
        %v850 = vsub.f32 %v593, %v771
        %v851 = vsub.f32 %v682, %v771
        %v852 = vsub.f32 %v596, %v774
        %v853 = vsub.f32 %v685, %v774
        %v854 = vsub.f32 %v598, %v777
        %v855 = vsub.f32 %v687, %v777
        %v856 = vsub.f32 %v601, %v780
        %v857 = vsub.f32 %v690, %v780
        %v858 = vsub.f32 %v603, %v783
        %v859 = vsub.f32 %v692, %v783
        %v860 = vsub.f32 %v606, %v786
        %v861 = vsub.f32 %v695, %v786
        %v862 = vsub.f32 %v608, %v789
        %v863 = vsub.f32 %v697, %v789
        %v864 = vsub.f32 %v611, %v792
        %v865 = vsub.f32 %v700, %v792
        %v866 = vsub.f32 %v613, %v795
        %v867 = vsub.f32 %v702, %v795
        %v868 = vsub.f32 %v616, %v798
        %v869 = vsub.f32 %v705, %v798
        %v870 = vsub.f32 %v618, %v801
        %v871 = vsub.f32 %v707, %v801
        %v872 = vsub.f32 %v621, %v804
        %v873 = vsub.f32 %v710, %v804
        %v874 = vsub.f32 %v623, %v807
        %v875 = vsub.f32 %v712, %v807
        %v876 = vsub.f32 %v626, %v810
        %v877 = vsub.f32 %v715, %v810
        %v878 = vsub.f32 %v628, %v813
        %v879 = vsub.f32 %v717, %v813
        %v880 = vsub.f32 %v631, %v816
        %v881 = vsub.f32 %v720, %v816
        %v882 = vsub.f32 %v633, %v819
        %v883 = vsub.f32 %v722, %v819
        %v884 = vmul.f32 %v820, 1.442695
        %v885 = vpow.pop %v884
        %v886 = vmul.f32 %v821, 1.442695
        %v887 = vpow.pop %v886
        %v888 = vmul.f32 %v822, 1.442695
        %v889 = vpow.pop %v888
        %v890 = vmul.f32 %v823, 1.442695
        %v891 = vpow.pop %v890
        %v892 = vmul.f32 %v824, 1.442695
        %v893 = vpow.pop %v892
        %v894 = vmul.f32 %v825, 1.442695
        %v895 = vpow.pop %v894
        %v896 = vmul.f32 %v826, 1.442695
        %v897 = vpow.pop %v896
        %v898 = vmul.f32 %v827, 1.442695
        %v899 = vpow.pop %v898
        %v900 = vmul.f32 %v828, 1.442695
        %v901 = vpow.pop %v900
        %v902 = vmul.f32 %v829, 1.442695
        %v903 = vpow.pop %v902
        %v904 = vmul.f32 %v830, 1.442695
        %v905 = vpow.pop %v904
        %v906 = vmul.f32 %v831, 1.442695
        %v907 = vpow.pop %v906
        %v908 = vmul.f32 %v832, 1.442695
        %v909 = vpow.pop %v908
        %v910 = vmul.f32 %v833, 1.442695
        %v911 = vpow.pop %v910
        %v912 = vmul.f32 %v834, 1.442695
        %v913 = vpow.pop %v912
        %v914 = vmul.f32 %v835, 1.442695
        %v915 = vpow.pop %v914
        %v916 = vmul.f32 %v836, 1.442695
        %v917 = vpow.pop %v916
        %v918 = vmul.f32 %v837, 1.442695
        %v919 = vpow.pop %v918
        %v920 = vmul.f32 %v838, 1.442695
        %v921 = vpow.pop %v920
        %v922 = vmul.f32 %v839, 1.442695
        %v923 = vpow.pop %v922
        %v924 = vmul.f32 %v840, 1.442695
        %v925 = vpow.pop %v924
        %v926 = vmul.f32 %v841, 1.442695
        %v927 = vpow.pop %v926
        %v928 = vmul.f32 %v842, 1.442695
        %v929 = vpow.pop %v928
        %v930 = vmul.f32 %v843, 1.442695
        %v931 = vpow.pop %v930
        %v932 = vmul.f32 %v844, 1.442695
        %v933 = vpow.pop %v932
        %v934 = vmul.f32 %v845, 1.442695
        %v935 = vpow.pop %v934
        %v936 = vmul.f32 %v846, 1.442695
        %v937 = vpow.pop %v936
        %v938 = vmul.f32 %v847, 1.442695
        %v939 = vpow.pop %v938
        %v940 = vmul.f32 %v848, 1.442695
        %v941 = vpow.pop %v940
        %v942 = vmul.f32 %v849, 1.442695
        %v943 = vpow.pop %v942
        %v944 = vmul.f32 %v850, 1.442695
        %v945 = vpow.pop %v944
        %v946 = vmul.f32 %v851, 1.442695
        %v947 = vpow.pop %v946
        %v948 = vmul.f32 %v852, 1.442695
        %v949 = vpow.pop %v948
        %v950 = vmul.f32 %v853, 1.442695
        %v951 = vpow.pop %v950
        %v952 = vmul.f32 %v854, 1.442695
        %v953 = vpow.pop %v952
        %v954 = vmul.f32 %v855, 1.442695
        %v955 = vpow.pop %v954
        %v956 = vmul.f32 %v856, 1.442695
        %v957 = vpow.pop %v956
        %v958 = vmul.f32 %v857, 1.442695
        %v959 = vpow.pop %v958
        %v960 = vmul.f32 %v858, 1.442695
        %v961 = vpow.pop %v960
        %v962 = vmul.f32 %v859, 1.442695
        %v963 = vpow.pop %v962
        %v964 = vmul.f32 %v860, 1.442695
        %v965 = vpow.pop %v964
        %v966 = vmul.f32 %v861, 1.442695
        %v967 = vpow.pop %v966
        %v968 = vmul.f32 %v862, 1.442695
        %v969 = vpow.pop %v968
        %v970 = vmul.f32 %v863, 1.442695
        %v971 = vpow.pop %v970
        %v972 = vmul.f32 %v864, 1.442695
        %v973 = vpow.pop %v972
        %v974 = vmul.f32 %v865, 1.442695
        %v975 = vpow.pop %v974
        %v976 = vmul.f32 %v866, 1.442695
        %v977 = vpow.pop %v976
        %v978 = vmul.f32 %v867, 1.442695
        %v979 = vpow.pop %v978
        %v980 = vmul.f32 %v868, 1.442695
        %v981 = vpow.pop %v980
        %v982 = vmul.f32 %v869, 1.442695
        %v983 = vpow.pop %v982
        %v984 = vmul.f32 %v870, 1.442695
        %v985 = vpow.pop %v984
        %v986 = vmul.f32 %v871, 1.442695
        %v987 = vpow.pop %v986
        %v988 = vmul.f32 %v872, 1.442695
        %v989 = vpow.pop %v988
        %v990 = vmul.f32 %v873, 1.442695
        %v991 = vpow.pop %v990
        %v992 = vmul.f32 %v874, 1.442695
        %v993 = vpow.pop %v992
        %v994 = vmul.f32 %v875, 1.442695
        %v995 = vpow.pop %v994
        %v996 = vmul.f32 %v876, 1.442695
        %v997 = vpow.pop %v996
        %v998 = vmul.f32 %v877, 1.442695
        %v999 = vpow.pop %v998
        %v1000 = vmul.f32 %v878, 1.442695
        %v1001 = vpow.pop %v1000
        %v1002 = vmul.f32 %v879, 1.442695
        %v1003 = vpow.pop %v1002
        %v1004 = vmul.f32 %v880, 1.442695
        %v1005 = vpow.pop %v1004
        %v1006 = vmul.f32 %v881, 1.442695
        %v1007 = vpow.pop %v1006
        %v1008 = vmul.f32 %v882, 1.442695
        %v1009 = vpow.pop %v1008
        %v1010 = vmul.f32 %v883, 1.442695
        %v1011 = vpow.pop %v1010
        %v1012 = vadd.f32 %v885, %v887
        %1013 = vadd.xlane.f32.xlu0 %v1012
        %v1014 = vpop.xlane.xlu0 %1013
        %v1015 = vadd.f32 %v889, %v891
        %1016 = vadd.xlane.f32.xlu0 %v1015
        %v1017 = vpop.xlane.xlu0 %1016
        %v1018 = vadd.f32 %v893, %v895
        %1019 = vadd.xlane.f32.xlu0 %v1018
        %v1020 = vpop.xlane.xlu0 %1019
        %v1021 = vadd.f32 %v897, %v899
        %1022 = vadd.xlane.f32.xlu0 %v1021
        %v1023 = vpop.xlane.xlu0 %1022
        %v1024 = vadd.f32 %v901, %v903
        %1025 = vadd.xlane.f32.xlu0 %v1024
        %v1026 = vpop.xlane.xlu0 %1025
        %v1027 = vadd.f32 %v905, %v907
        %1028 = vadd.xlane.f32.xlu0 %v1027
        %v1029 = vpop.xlane.xlu0 %1028
        %v1030 = vadd.f32 %v909, %v911
        %1031 = vadd.xlane.f32.xlu0 %v1030
        %v1032 = vpop.xlane.xlu0 %1031
        %v1033 = vadd.f32 %v913, %v915
        %1034 = vadd.xlane.f32.xlu0 %v1033
        %v1035 = vpop.xlane.xlu0 %1034
        %v1036 = vadd.f32 %v917, %v919
        %1037 = vadd.xlane.f32.xlu0 %v1036
        %v1038 = vpop.xlane.xlu0 %1037
        %v1039 = vadd.f32 %v921, %v923
        %1040 = vadd.xlane.f32.xlu0 %v1039
        %v1041 = vpop.xlane.xlu0 %1040
        %v1042 = vadd.f32 %v925, %v927
        %1043 = vadd.xlane.f32.xlu0 %v1042
        %v1044 = vpop.xlane.xlu0 %1043
        %v1045 = vadd.f32 %v929, %v931
        %1046 = vadd.xlane.f32.xlu0 %v1045
        %v1047 = vpop.xlane.xlu0 %1046
        %v1048 = vadd.f32 %v933, %v935
        %1049 = vadd.xlane.f32.xlu0 %v1048
        %v1050 = vpop.xlane.xlu0 %1049
        %v1051 = vadd.f32 %v937, %v939
        %1052 = vadd.xlane.f32.xlu0 %v1051
        %v1053 = vpop.xlane.xlu0 %1052
        %v1054 = vadd.f32 %v941, %v943
        %1055 = vadd.xlane.f32.xlu0 %v1054
        %v1056 = vpop.xlane.xlu0 %1055
        %v1057 = vadd.f32 %v945, %v947
        %1058 = vadd.xlane.f32.xlu0 %v1057
        %v1059 = vpop.xlane.xlu0 %1058
        %v1060 = vadd.f32 %v949, %v951
        %1061 = vadd.xlane.f32.xlu0 %v1060
        %v1062 = vpop.xlane.xlu0 %1061
        %v1063 = vadd.f32 %v953, %v955
        %1064 = vadd.xlane.f32.xlu0 %v1063
        %v1065 = vpop.xlane.xlu0 %1064
        %v1066 = vadd.f32 %v957, %v959
        %1067 = vadd.xlane.f32.xlu0 %v1066
        %v1068 = vpop.xlane.xlu0 %1067
        %v1069 = vadd.f32 %v961, %v963
        %1070 = vadd.xlane.f32.xlu0 %v1069
        %v1071 = vpop.xlane.xlu0 %1070
        %v1072 = vadd.f32 %v965, %v967
        %1073 = vadd.xlane.f32.xlu0 %v1072
        %v1074 = vpop.xlane.xlu0 %1073
        %v1075 = vadd.f32 %v969, %v971
        %1076 = vadd.xlane.f32.xlu0 %v1075
        %v1077 = vpop.xlane.xlu0 %1076
        %v1078 = vadd.f32 %v973, %v975
        %1079 = vadd.xlane.f32.xlu0 %v1078
        %v1080 = vpop.xlane.xlu0 %1079
        %v1081 = vadd.f32 %v977, %v979
        %1082 = vadd.xlane.f32.xlu0 %v1081
        %v1083 = vpop.xlane.xlu0 %1082
        %v1084 = vadd.f32 %v981, %v983
        %1085 = vadd.xlane.f32.xlu0 %v1084
        %v1086 = vpop.xlane.xlu0 %1085
        %v1087 = vadd.f32 %v985, %v987
        %1088 = vadd.xlane.f32.xlu0 %v1087
        %v1089 = vpop.xlane.xlu0 %1088
        %v1090 = vadd.f32 %v989, %v991
        %1091 = vadd.xlane.f32.xlu0 %v1090
        %v1092 = vpop.xlane.xlu0 %1091
        %v1093 = vadd.f32 %v993, %v995
        %1094 = vadd.xlane.f32.xlu0 %v1093
        %v1095 = vpop.xlane.xlu0 %1094
        %v1096 = vadd.f32 %v997, %v999
        %1097 = vadd.xlane.f32.xlu0 %v1096
        %v1098 = vpop.xlane.xlu0 %1097
        %v1099 = vadd.f32 %v1001, %v1003
        %1100 = vadd.xlane.f32.xlu0 %v1099
        %v1101 = vpop.xlane.xlu0 %1100
        %v1102 = vadd.f32 %v1005, %v1007
        %1103 = vadd.xlane.f32.xlu0 %v1102
        %v1104 = vpop.xlane.xlu0 %1103
        %v1105 = vadd.f32 %v1009, %v1011
        %1106 = vadd.xlane.f32.xlu0 %v1105
        %v1107 = vpop.xlane.xlu0 %1106
        %v1108 = vpack.c.bf16 %v887, %v885
        %v1109 = vpack.c.bf16 %v891, %v889
        %v1110 = vpack.c.bf16 %v895, %v893
        %v1111 = vpack.c.bf16 %v899, %v897
        %v1112 = vpack.c.bf16 %v903, %v901
        %v1113 = vpack.c.bf16 %v907, %v905
        %v1114 = vpack.c.bf16 %v911, %v909
        %v1115 = vpack.c.bf16 %v915, %v913
        %v1116 = vpack.c.bf16 %v919, %v917
        %v1117 = vpack.c.bf16 %v923, %v921
        %v1118 = vpack.c.bf16 %v927, %v925
        %v1119 = vpack.c.bf16 %v931, %v929
        %v1120 = vpack.c.bf16 %v935, %v933
        %v1121 = vpack.c.bf16 %v939, %v937
        %v1122 = vpack.c.bf16 %v943, %v941
        %v1123 = vpack.c.bf16 %v947, %v945
        %v1124 = vpack.c.bf16 %v951, %v949
        %v1125 = vpack.c.bf16 %v955, %v953
        %v1126 = vpack.c.bf16 %v959, %v957
        %v1127 = vpack.c.bf16 %v963, %v961
        %v1128 = vpack.c.bf16 %v967, %v965
        %v1129 = vpack.c.bf16 %v971, %v969
        %v1130 = vpack.c.bf16 %v975, %v973
        %v1131 = vpack.c.bf16 %v979, %v977
        %v1132 = vpack.c.bf16 %v983, %v981
        %v1133 = vpack.c.bf16 %v987, %v985
        %v1134 = vpack.c.bf16 %v991, %v989
        %v1135 = vpack.c.bf16 %v995, %v993
        %v1136 = vpack.c.bf16 %v999, %v997
        %v1137 = vpack.c.bf16 %v1003, %v1001
        %v1138 = vpack.c.bf16 %v1007, %v1005
        %v1139 = vpack.c.bf16 %v1011, %v1009
        %v1172 = vunpack.c.l.b16 %v1108
        %v1173 = vunpack.c.h.b16 %v1108
        %v1174 = vunpack.c.l.b16 %v1109
        %v1175 = vunpack.c.h.b16 %v1109
        %v1176 = vunpack.c.l.b16 %v1110
        %v1177 = vunpack.c.h.b16 %v1110
        %v1178 = vunpack.c.l.b16 %v1111
        %v1179 = vunpack.c.h.b16 %v1111
        %v1180 = vunpack.c.l.b16 %v1112
        %v1181 = vunpack.c.h.b16 %v1112
        %v1182 = vunpack.c.l.b16 %v1113
        %v1183 = vunpack.c.h.b16 %v1113
        %v1184 = vunpack.c.l.b16 %v1114
        %v1185 = vunpack.c.h.b16 %v1114
        %v1186 = vunpack.c.l.b16 %v1115
        %v1187 = vunpack.c.h.b16 %v1115
        %v1188 = vunpack.c.l.b16 %v1116
        %v1189 = vunpack.c.h.b16 %v1116
        %v1190 = vunpack.c.l.b16 %v1117
        %v1191 = vunpack.c.h.b16 %v1117
        %v1192 = vunpack.c.l.b16 %v1118
        %v1193 = vunpack.c.h.b16 %v1118
        %v1194 = vunpack.c.l.b16 %v1119
        %v1195 = vunpack.c.h.b16 %v1119
        %v1196 = vunpack.c.l.b16 %v1120
        %v1197 = vunpack.c.h.b16 %v1120
        %v1198 = vunpack.c.l.b16 %v1121
        %v1199 = vunpack.c.h.b16 %v1121
        %v1200 = vunpack.c.l.b16 %v1122
        %v1201 = vunpack.c.h.b16 %v1122
        %v1202 = vunpack.c.l.b16 %v1123
        %v1203 = vunpack.c.h.b16 %v1123
        %v1204 = vunpack.c.l.b16 %v1124
        %v1205 = vunpack.c.h.b16 %v1124
        %v1206 = vunpack.c.l.b16 %v1125
        %v1207 = vunpack.c.h.b16 %v1125
        %v1208 = vunpack.c.l.b16 %v1126
        %v1209 = vunpack.c.h.b16 %v1126
        %v1210 = vunpack.c.l.b16 %v1127
        %v1211 = vunpack.c.h.b16 %v1127
        %v1212 = vunpack.c.l.b16 %v1128
        %v1213 = vunpack.c.h.b16 %v1128
        %v1214 = vunpack.c.l.b16 %v1129
        %v1215 = vunpack.c.h.b16 %v1129
        %v1216 = vunpack.c.l.b16 %v1130
        %v1217 = vunpack.c.h.b16 %v1130
        %v1218 = vunpack.c.l.b16 %v1131
        %v1219 = vunpack.c.h.b16 %v1131
        %v1220 = vunpack.c.l.b16 %v1132
        %v1221 = vunpack.c.h.b16 %v1132
        %v1222 = vunpack.c.l.b16 %v1133
        %v1223 = vunpack.c.h.b16 %v1133
        %v1224 = vunpack.c.l.b16 %v1134
        %v1225 = vunpack.c.h.b16 %v1134
        %v1226 = vunpack.c.l.b16 %v1135
        %v1227 = vunpack.c.h.b16 %v1135
        %v1228 = vunpack.c.l.b16 %v1136
        %v1229 = vunpack.c.h.b16 %v1136
        %v1230 = vunpack.c.l.b16 %v1137
        %v1231 = vunpack.c.h.b16 %v1137
        %v1232 = vunpack.c.l.b16 %v1138
        %v1233 = vunpack.c.h.b16 %v1138
        %v1234 = vunpack.c.l.b16 %v1139
        %v1235 = vunpack.c.h.b16 %v1139
        %v1236 = vpack.c.b16 %v1174, %v1172
        %v1237 = vpack.c.b16 %v1175, %v1173
        %v1238 = vpack.c.b16 %v1178, %v1176
        %v1239 = vpack.c.b16 %v1179, %v1177
        %v1240 = vpack.c.b16 %v1182, %v1180
        %v1241 = vpack.c.b16 %v1183, %v1181
        %v1242 = vpack.c.b16 %v1186, %v1184
        %v1243 = vpack.c.b16 %v1187, %v1185
        %v1244 = vpack.c.b16 %v1190, %v1188
        %v1245 = vpack.c.b16 %v1191, %v1189
        %v1246 = vpack.c.b16 %v1194, %v1192
        %v1247 = vpack.c.b16 %v1195, %v1193
        %v1248 = vpack.c.b16 %v1198, %v1196
        %v1249 = vpack.c.b16 %v1199, %v1197
        %v1250 = vpack.c.b16 %v1202, %v1200
        %v1251 = vpack.c.b16 %v1203, %v1201
        %v1252 = vpack.c.b16 %v1206, %v1204
        %v1253 = vpack.c.b16 %v1207, %v1205
        %v1254 = vpack.c.b16 %v1210, %v1208
        %v1255 = vpack.c.b16 %v1211, %v1209
        %v1256 = vpack.c.b16 %v1214, %v1212
        %v1257 = vpack.c.b16 %v1215, %v1213
        %v1258 = vpack.c.b16 %v1218, %v1216
        %v1259 = vpack.c.b16 %v1219, %v1217
        %v1260 = vpack.c.b16 %v1222, %v1220
        %v1261 = vpack.c.b16 %v1223, %v1221
        %v1262 = vpack.c.b16 %v1226, %v1224
        %v1263 = vpack.c.b16 %v1227, %v1225
        %v1264 = vpack.c.b16 %v1230, %v1228
        %v1265 = vpack.c.b16 %v1231, %v1229
        %v1266 = vpack.c.b16 %v1234, %v1232
        %v1267 = vpack.c.b16 %v1235, %v1233
        %1300 = vmatpush.bf16.msra.mxu0 %v521
        %1301 = vmatpush.bf16.msra.mxu0 %v520
        %1302 = vmatpush.bf16.msra.mxu0 %v519
        %1303 = vmatpush.bf16.msra.mxu0 %v518
        %1304 = vmatpush.bf16.msra.mxu0 %v517
        %1305 = vmatpush.bf16.msra.mxu0 %v516
        %1306 = vmatpush.bf16.msra.mxu0 %v515
        %1307 = vmatpush.bf16.msra.mxu0 %v514
        %1308 = vmatmul.bf16.gmra.mxu0 %v1236
        %v1309 = vpop.f32.mrf.mxu0
        %v1310 = vadd.f32 0.0, %v1309
        %v1311 = vpop.f32.mrf.mxu0
        %v1312 = vadd.f32 0.0, %v1311
        %1313 = vmatmul.bf16.gmra.mxu0 %v1238
        %v1314 = vpop.f32.mrf.mxu0
        %v1315 = vadd.f32 0.0, %v1314
        %v1316 = vpop.f32.mrf.mxu0
        %v1317 = vadd.f32 0.0, %v1316
        %1318 = vmatmul.bf16.gmra.mxu0 %v1240
        %v1319 = vpop.f32.mrf.mxu0
        %v1320 = vadd.f32 0.0, %v1319
        %v1321 = vpop.f32.mrf.mxu0
        %v1322 = vadd.f32 0.0, %v1321
        %1323 = vmatmul.bf16.gmra.mxu0 %v1242
        %v1324 = vpop.f32.mrf.mxu0
        %v1325 = vadd.f32 0.0, %v1324
        %v1326 = vpop.f32.mrf.mxu0
        %v1327 = vadd.f32 0.0, %v1326
        %1328 = vmatmul.bf16.gmra.mxu0 %v1244
        %v1329 = vpop.f32.mrf.mxu0
        %v1330 = vadd.f32 0.0, %v1329
        %v1331 = vpop.f32.mrf.mxu0
        %v1332 = vadd.f32 0.0, %v1331
        %1333 = vmatmul.bf16.gmra.mxu0 %v1246
        %v1334 = vpop.f32.mrf.mxu0
        %v1335 = vadd.f32 0.0, %v1334
        %v1336 = vpop.f32.mrf.mxu0
        %v1337 = vadd.f32 0.0, %v1336
        %1338 = vmatmul.bf16.gmra.mxu0 %v1248
        %v1339 = vpop.f32.mrf.mxu0
        %v1340 = vadd.f32 0.0, %v1339
        %v1341 = vpop.f32.mrf.mxu0
        %v1342 = vadd.f32 0.0, %v1341
        %1343 = vmatmul.bf16.gmra.mxu0 %v1250
        %v1344 = vpop.f32.mrf.mxu0
        %v1345 = vadd.f32 0.0, %v1344
        %v1346 = vpop.f32.mrf.mxu0
        %v1347 = vadd.f32 0.0, %v1346
        %1348 = vmatmul.bf16.gmra.mxu0 %v1252
        %v1349 = vpop.f32.mrf.mxu0
        %v1350 = vadd.f32 0.0, %v1349
        %v1351 = vpop.f32.mrf.mxu0
        %v1352 = vadd.f32 0.0, %v1351
        %1353 = vmatmul.bf16.gmra.mxu0 %v1254
        %v1354 = vpop.f32.mrf.mxu0
        %v1355 = vadd.f32 0.0, %v1354
        %v1356 = vpop.f32.mrf.mxu0
        %v1357 = vadd.f32 0.0, %v1356
        %1358 = vmatmul.bf16.gmra.mxu0 %v1256
        %v1359 = vpop.f32.mrf.mxu0
        %v1360 = vadd.f32 0.0, %v1359
        %v1361 = vpop.f32.mrf.mxu0
        %v1362 = vadd.f32 0.0, %v1361
        %1363 = vmatmul.bf16.gmra.mxu0 %v1258
        %v1364 = vpop.f32.mrf.mxu0
        %v1365 = vadd.f32 0.0, %v1364
        %v1366 = vpop.f32.mrf.mxu0
        %v1367 = vadd.f32 0.0, %v1366
        %1368 = vmatmul.bf16.gmra.mxu0 %v1260
        %v1369 = vpop.f32.mrf.mxu0
        %v1370 = vadd.f32 0.0, %v1369
        %v1371 = vpop.f32.mrf.mxu0
        %v1372 = vadd.f32 0.0, %v1371
        %1373 = vmatmul.bf16.gmra.mxu0 %v1262
        %v1374 = vpop.f32.mrf.mxu0
        %v1375 = vadd.f32 0.0, %v1374
        %v1376 = vpop.f32.mrf.mxu0
        %v1377 = vadd.f32 0.0, %v1376
        %1378 = vmatmul.bf16.gmra.mxu0 %v1264
        %v1379 = vpop.f32.mrf.mxu0
        %v1380 = vadd.f32 0.0, %v1379
        %v1381 = vpop.f32.mrf.mxu0
        %v1382 = vadd.f32 0.0, %v1381
        %1383 = vmatmul.bf16.gmra.mxu0 %v1266
        %v1384 = vpop.f32.mrf.mxu0
        %v1385 = vadd.f32 0.0, %v1384
        %v1386 = vpop.f32.mrf.mxu0
        %v1387 = vadd.f32 0.0, %v1386
        %1388 = vdwg.mxu0
        %1389 = vmatpush.bf16.msra.mxu0 %v529
        %1390 = vmatpush.bf16.msra.mxu0 %v528
        %1391 = vmatpush.bf16.msra.mxu0 %v527
        %1392 = vmatpush.bf16.msra.mxu0 %v526
        %1393 = vmatpush.bf16.msra.mxu0 %v525
        %1394 = vmatpush.bf16.msra.mxu0 %v524
        %1395 = vmatpush.bf16.msra.mxu0 %v523
        %1396 = vmatpush.bf16.msra.mxu0 %v522
        %1397 = vmatmul.bf16.gmra.mxu0 %v1237
        %v1398 = vpop.f32.mrf.mxu0
        %v1399 = vadd.f32 %v1310, %v1398
        %v1400 = vpop.f32.mrf.mxu0
        %v1401 = vadd.f32 %v1312, %v1400
        %1402 = vmatmul.bf16.gmra.mxu0 %v1239
        %v1403 = vpop.f32.mrf.mxu0
        %v1404 = vadd.f32 %v1315, %v1403
        %v1405 = vpop.f32.mrf.mxu0
        %v1406 = vadd.f32 %v1317, %v1405
        %1407 = vmatmul.bf16.gmra.mxu0 %v1241
        %v1408 = vpop.f32.mrf.mxu0
        %v1409 = vadd.f32 %v1320, %v1408
        %v1410 = vpop.f32.mrf.mxu0
        %v1411 = vadd.f32 %v1322, %v1410
        %1412 = vmatmul.bf16.gmra.mxu0 %v1243
        %v1413 = vpop.f32.mrf.mxu0
        %v1414 = vadd.f32 %v1325, %v1413
        %v1415 = vpop.f32.mrf.mxu0
        %v1416 = vadd.f32 %v1327, %v1415
        %1417 = vmatmul.bf16.gmra.mxu0 %v1245
        %v1418 = vpop.f32.mrf.mxu0
        %v1419 = vadd.f32 %v1330, %v1418
        %v1420 = vpop.f32.mrf.mxu0
        %v1421 = vadd.f32 %v1332, %v1420
        %1422 = vmatmul.bf16.gmra.mxu0 %v1247
        %v1423 = vpop.f32.mrf.mxu0
        %v1424 = vadd.f32 %v1335, %v1423
        %v1425 = vpop.f32.mrf.mxu0
        %v1426 = vadd.f32 %v1337, %v1425
        %1427 = vmatmul.bf16.gmra.mxu0 %v1249
        %v1428 = vpop.f32.mrf.mxu0
        %v1429 = vadd.f32 %v1340, %v1428
        %v1430 = vpop.f32.mrf.mxu0
        %v1431 = vadd.f32 %v1342, %v1430
        %1432 = vmatmul.bf16.gmra.mxu0 %v1251
        %v1433 = vpop.f32.mrf.mxu0
        %v1434 = vadd.f32 %v1345, %v1433
        %v1435 = vpop.f32.mrf.mxu0
        %v1436 = vadd.f32 %v1347, %v1435
        %1437 = vmatmul.bf16.gmra.mxu0 %v1253
        %v1438 = vpop.f32.mrf.mxu0
        %v1439 = vadd.f32 %v1350, %v1438
        %v1440 = vpop.f32.mrf.mxu0
        %v1441 = vadd.f32 %v1352, %v1440
        %1442 = vmatmul.bf16.gmra.mxu0 %v1255
        %v1443 = vpop.f32.mrf.mxu0
        %v1444 = vadd.f32 %v1355, %v1443
        %v1445 = vpop.f32.mrf.mxu0
        %v1446 = vadd.f32 %v1357, %v1445
        %1447 = vmatmul.bf16.gmra.mxu0 %v1257
        %v1448 = vpop.f32.mrf.mxu0
        %v1449 = vadd.f32 %v1360, %v1448
        %v1450 = vpop.f32.mrf.mxu0
        %v1451 = vadd.f32 %v1362, %v1450
        %1452 = vmatmul.bf16.gmra.mxu0 %v1259
        %v1453 = vpop.f32.mrf.mxu0
        %v1454 = vadd.f32 %v1365, %v1453
        %v1455 = vpop.f32.mrf.mxu0
        %v1456 = vadd.f32 %v1367, %v1455
        %1457 = vmatmul.bf16.gmra.mxu0 %v1261
        %v1458 = vpop.f32.mrf.mxu0
        %v1459 = vadd.f32 %v1370, %v1458
        %v1460 = vpop.f32.mrf.mxu0
        %v1461 = vadd.f32 %v1372, %v1460
        %1462 = vmatmul.bf16.gmra.mxu0 %v1263
        %v1463 = vpop.f32.mrf.mxu0
        %v1464 = vadd.f32 %v1375, %v1463
        %v1465 = vpop.f32.mrf.mxu0
        %v1466 = vadd.f32 %v1377, %v1465
        %1467 = vmatmul.bf16.gmra.mxu0 %v1265
        %v1468 = vpop.f32.mrf.mxu0
        %v1469 = vadd.f32 %v1380, %v1468
        %v1470 = vpop.f32.mrf.mxu0
        %v1471 = vadd.f32 %v1382, %v1470
        %1472 = vmatmul.bf16.gmra.mxu0 %v1267
        %v1473 = vpop.f32.mrf.mxu0
        %v1474 = vadd.f32 %v1385, %v1473
        %v1475 = vpop.f32.mrf.mxu0
        %v1476 = vadd.f32 %v1387, %v1475
        %1477 = vdwg.mxu0
        %v1478 = vrcp.pop %v1014
        %v1479 = vmul.f32 %v1014, %v1478
        %v1480 = vsub.f32 1.0, %v1479
        %v1481 = vmul.f32 %v1478, %v1480
        %v1482 = vadd.f32 %v1478, %v1481
        %vm1483 = vweird.f32 %v1014
        %vm1484 = vweird.f32 %v1478
        %vm1485 = vmor %vm1483, %vm1484
        %v1486 = vsel %vm1485, %v1478, %v1482
        %v1487 = vand.u32 2147483647, %v1014
        %vm1488 = vcmp.eq.f32.partialorder %v1487, 8.507059e+37
        %v1489 = vand.u32 %v1014, 2147483648
        %v1490 = vor.u32 1.1754944e-38, %v1489
        %v1491 = vsel %vm1488, %v1490, %v1486
        %v1492 = vmul.f32 1.0, %v1491
        %v1493 = vrcp.pop %v1017
        %v1494 = vmul.f32 %v1017, %v1493
        %v1495 = vsub.f32 1.0, %v1494
        %v1496 = vmul.f32 %v1493, %v1495
        %v1497 = vadd.f32 %v1493, %v1496
        %vm1498 = vweird.f32 %v1017
        %vm1499 = vweird.f32 %v1493
        %vm1500 = vmor %vm1498, %vm1499
        %v1501 = vsel %vm1500, %v1493, %v1497
        %v1502 = vand.u32 2147483647, %v1017
        %vm1503 = vcmp.eq.f32.partialorder %v1502, 8.507059e+37
        %v1504 = vand.u32 %v1017, 2147483648
        %v1505 = vor.u32 1.1754944e-38, %v1504
        %v1506 = vsel %vm1503, %v1505, %v1501
        %v1507 = vmul.f32 1.0, %v1506
        %v1508 = vrcp.pop %v1020
        %v1509 = vmul.f32 %v1020, %v1508
        %v1510 = vsub.f32 1.0, %v1509
        %v1511 = vmul.f32 %v1508, %v1510
        %v1512 = vadd.f32 %v1508, %v1511
        %vm1513 = vweird.f32 %v1020
        %vm1514 = vweird.f32 %v1508
        %vm1515 = vmor %vm1513, %vm1514
        %v1516 = vsel %vm1515, %v1508, %v1512
        %v1517 = vand.u32 2147483647, %v1020
        %vm1518 = vcmp.eq.f32.partialorder %v1517, 8.507059e+37
        %v1519 = vand.u32 %v1020, 2147483648
        %v1520 = vor.u32 1.1754944e-38, %v1519
        %v1521 = vsel %vm1518, %v1520, %v1516
        %v1522 = vmul.f32 1.0, %v1521
        %v1523 = vrcp.pop %v1023
        %v1524 = vmul.f32 %v1023, %v1523
        %v1525 = vsub.f32 1.0, %v1524
        %v1526 = vmul.f32 %v1523, %v1525
        %v1527 = vadd.f32 %v1523, %v1526
        %vm1528 = vweird.f32 %v1023
        %vm1529 = vweird.f32 %v1523
        %vm1530 = vmor %vm1528, %vm1529
        %v1531 = vsel %vm1530, %v1523, %v1527
        %v1532 = vand.u32 2147483647, %v1023
        %vm1533 = vcmp.eq.f32.partialorder %v1532, 8.507059e+37
        %v1534 = vand.u32 %v1023, 2147483648
        %v1535 = vor.u32 1.1754944e-38, %v1534
        %v1536 = vsel %vm1533, %v1535, %v1531
        %v1537 = vmul.f32 1.0, %v1536
        %v1538 = vrcp.pop %v1026
        %v1539 = vmul.f32 %v1026, %v1538
        %v1540 = vsub.f32 1.0, %v1539
        %v1541 = vmul.f32 %v1538, %v1540
        %v1542 = vadd.f32 %v1538, %v1541
        %vm1543 = vweird.f32 %v1026
        %vm1544 = vweird.f32 %v1538
        %vm1545 = vmor %vm1543, %vm1544
        %v1546 = vsel %vm1545, %v1538, %v1542
        %v1547 = vand.u32 2147483647, %v1026
        %vm1548 = vcmp.eq.f32.partialorder %v1547, 8.507059e+37
        %v1549 = vand.u32 %v1026, 2147483648
        %v1550 = vor.u32 1.1754944e-38, %v1549
        %v1551 = vsel %vm1548, %v1550, %v1546
        %v1552 = vmul.f32 1.0, %v1551
        %v1553 = vrcp.pop %v1029
        %v1554 = vmul.f32 %v1029, %v1553
        %v1555 = vsub.f32 1.0, %v1554
        %v1556 = vmul.f32 %v1553, %v1555
        %v1557 = vadd.f32 %v1553, %v1556
        %vm1558 = vweird.f32 %v1029
        %vm1559 = vweird.f32 %v1553
        %vm1560 = vmor %vm1558, %vm1559
        %v1561 = vsel %vm1560, %v1553, %v1557
        %v1562 = vand.u32 2147483647, %v1029
        %vm1563 = vcmp.eq.f32.partialorder %v1562, 8.507059e+37
        %v1564 = vand.u32 %v1029, 2147483648
        %v1565 = vor.u32 1.1754944e-38, %v1564
        %v1566 = vsel %vm1563, %v1565, %v1561
        %v1567 = vmul.f32 1.0, %v1566
        %v1568 = vrcp.pop %v1032
        %v1569 = vmul.f32 %v1032, %v1568
        %v1570 = vsub.f32 1.0, %v1569
        %v1571 = vmul.f32 %v1568, %v1570
        %v1572 = vadd.f32 %v1568, %v1571
        %vm1573 = vweird.f32 %v1032
        %vm1574 = vweird.f32 %v1568
        %vm1575 = vmor %vm1573, %vm1574
        %v1576 = vsel %vm1575, %v1568, %v1572
        %v1577 = vand.u32 2147483647, %v1032
        %vm1578 = vcmp.eq.f32.partialorder %v1577, 8.507059e+37
        %v1579 = vand.u32 %v1032, 2147483648
        %v1580 = vor.u32 1.1754944e-38, %v1579
        %v1581 = vsel %vm1578, %v1580, %v1576
        %v1582 = vmul.f32 1.0, %v1581
        %v1583 = vrcp.pop %v1035
        %v1584 = vmul.f32 %v1035, %v1583
        %v1585 = vsub.f32 1.0, %v1584
        %v1586 = vmul.f32 %v1583, %v1585
        %v1587 = vadd.f32 %v1583, %v1586
        %vm1588 = vweird.f32 %v1035
        %vm1589 = vweird.f32 %v1583
        %vm1590 = vmor %vm1588, %vm1589
        %v1591 = vsel %vm1590, %v1583, %v1587
        %v1592 = vand.u32 2147483647, %v1035
        %vm1593 = vcmp.eq.f32.partialorder %v1592, 8.507059e+37
        %v1594 = vand.u32 %v1035, 2147483648
        %v1595 = vor.u32 1.1754944e-38, %v1594
        %v1596 = vsel %vm1593, %v1595, %v1591
        %v1597 = vmul.f32 1.0, %v1596
        %v1598 = vrcp.pop %v1038
        %v1599 = vmul.f32 %v1038, %v1598
        %v1600 = vsub.f32 1.0, %v1599
        %v1601 = vmul.f32 %v1598, %v1600
        %v1602 = vadd.f32 %v1598, %v1601
        %vm1603 = vweird.f32 %v1038
        %vm1604 = vweird.f32 %v1598
        %vm1605 = vmor %vm1603, %vm1604
        %v1606 = vsel %vm1605, %v1598, %v1602
        %v1607 = vand.u32 2147483647, %v1038
        %vm1608 = vcmp.eq.f32.partialorder %v1607, 8.507059e+37
        %v1609 = vand.u32 %v1038, 2147483648
        %v1610 = vor.u32 1.1754944e-38, %v1609
        %v1611 = vsel %vm1608, %v1610, %v1606
        %v1612 = vmul.f32 1.0, %v1611
        %v1613 = vrcp.pop %v1041
        %v1614 = vmul.f32 %v1041, %v1613
        %v1615 = vsub.f32 1.0, %v1614
        %v1616 = vmul.f32 %v1613, %v1615
        %v1617 = vadd.f32 %v1613, %v1616
        %vm1618 = vweird.f32 %v1041
        %vm1619 = vweird.f32 %v1613
        %vm1620 = vmor %vm1618, %vm1619
        %v1621 = vsel %vm1620, %v1613, %v1617
        %v1622 = vand.u32 2147483647, %v1041
        %vm1623 = vcmp.eq.f32.partialorder %v1622, 8.507059e+37
        %v1624 = vand.u32 %v1041, 2147483648
        %v1625 = vor.u32 1.1754944e-38, %v1624
        %v1626 = vsel %vm1623, %v1625, %v1621
        %v1627 = vmul.f32 1.0, %v1626
        %v1628 = vrcp.pop %v1044
        %v1629 = vmul.f32 %v1044, %v1628
        %v1630 = vsub.f32 1.0, %v1629
        %v1631 = vmul.f32 %v1628, %v1630
        %v1632 = vadd.f32 %v1628, %v1631
        %vm1633 = vweird.f32 %v1044
        %vm1634 = vweird.f32 %v1628
        %vm1635 = vmor %vm1633, %vm1634
        %v1636 = vsel %vm1635, %v1628, %v1632
        %v1637 = vand.u32 2147483647, %v1044
        %vm1638 = vcmp.eq.f32.partialorder %v1637, 8.507059e+37
        %v1639 = vand.u32 %v1044, 2147483648
        %v1640 = vor.u32 1.1754944e-38, %v1639
        %v1641 = vsel %vm1638, %v1640, %v1636
        %v1642 = vmul.f32 1.0, %v1641
        %v1643 = vrcp.pop %v1047
        %v1644 = vmul.f32 %v1047, %v1643
        %v1645 = vsub.f32 1.0, %v1644
        %v1646 = vmul.f32 %v1643, %v1645
        %v1647 = vadd.f32 %v1643, %v1646
        %vm1648 = vweird.f32 %v1047
        %vm1649 = vweird.f32 %v1643
        %vm1650 = vmor %vm1648, %vm1649
        %v1651 = vsel %vm1650, %v1643, %v1647
        %v1652 = vand.u32 2147483647, %v1047
        %vm1653 = vcmp.eq.f32.partialorder %v1652, 8.507059e+37
        %v1654 = vand.u32 %v1047, 2147483648
        %v1655 = vor.u32 1.1754944e-38, %v1654
        %v1656 = vsel %vm1653, %v1655, %v1651
        %v1657 = vmul.f32 1.0, %v1656
        %v1658 = vrcp.pop %v1050
        %v1659 = vmul.f32 %v1050, %v1658
        %v1660 = vsub.f32 1.0, %v1659
        %v1661 = vmul.f32 %v1658, %v1660
        %v1662 = vadd.f32 %v1658, %v1661
        %vm1663 = vweird.f32 %v1050
        %vm1664 = vweird.f32 %v1658
        %vm1665 = vmor %vm1663, %vm1664
        %v1666 = vsel %vm1665, %v1658, %v1662
        %v1667 = vand.u32 2147483647, %v1050
        %vm1668 = vcmp.eq.f32.partialorder %v1667, 8.507059e+37
        %v1669 = vand.u32 %v1050, 2147483648
        %v1670 = vor.u32 1.1754944e-38, %v1669
        %v1671 = vsel %vm1668, %v1670, %v1666
        %v1672 = vmul.f32 1.0, %v1671
        %v1673 = vrcp.pop %v1053
        %v1674 = vmul.f32 %v1053, %v1673
        %v1675 = vsub.f32 1.0, %v1674
        %v1676 = vmul.f32 %v1673, %v1675
        %v1677 = vadd.f32 %v1673, %v1676
        %vm1678 = vweird.f32 %v1053
        %vm1679 = vweird.f32 %v1673
        %vm1680 = vmor %vm1678, %vm1679
        %v1681 = vsel %vm1680, %v1673, %v1677
        %v1682 = vand.u32 2147483647, %v1053
        %vm1683 = vcmp.eq.f32.partialorder %v1682, 8.507059e+37
        %v1684 = vand.u32 %v1053, 2147483648
        %v1685 = vor.u32 1.1754944e-38, %v1684
        %v1686 = vsel %vm1683, %v1685, %v1681
        %v1687 = vmul.f32 1.0, %v1686
        %v1688 = vrcp.pop %v1056
        %v1689 = vmul.f32 %v1056, %v1688
        %v1690 = vsub.f32 1.0, %v1689
        %v1691 = vmul.f32 %v1688, %v1690
        %v1692 = vadd.f32 %v1688, %v1691
        %vm1693 = vweird.f32 %v1056
        %vm1694 = vweird.f32 %v1688
        %vm1695 = vmor %vm1693, %vm1694
        %v1696 = vsel %vm1695, %v1688, %v1692
        %v1697 = vand.u32 2147483647, %v1056
        %vm1698 = vcmp.eq.f32.partialorder %v1697, 8.507059e+37
        %v1699 = vand.u32 %v1056, 2147483648
        %v1700 = vor.u32 1.1754944e-38, %v1699
        %v1701 = vsel %vm1698, %v1700, %v1696
        %v1702 = vmul.f32 1.0, %v1701
        %v1703 = vrcp.pop %v1059
        %v1704 = vmul.f32 %v1059, %v1703
        %v1705 = vsub.f32 1.0, %v1704
        %v1706 = vmul.f32 %v1703, %v1705
        %v1707 = vadd.f32 %v1703, %v1706
        %vm1708 = vweird.f32 %v1059
        %vm1709 = vweird.f32 %v1703
        %vm1710 = vmor %vm1708, %vm1709
        %v1711 = vsel %vm1710, %v1703, %v1707
        %v1712 = vand.u32 2147483647, %v1059
        %vm1713 = vcmp.eq.f32.partialorder %v1712, 8.507059e+37
        %v1714 = vand.u32 %v1059, 2147483648
        %v1715 = vor.u32 1.1754944e-38, %v1714
        %v1716 = vsel %vm1713, %v1715, %v1711
        %v1717 = vmul.f32 1.0, %v1716
        %v1718 = vrcp.pop %v1062
        %v1719 = vmul.f32 %v1062, %v1718
        %v1720 = vsub.f32 1.0, %v1719
        %v1721 = vmul.f32 %v1718, %v1720
        %v1722 = vadd.f32 %v1718, %v1721
        %vm1723 = vweird.f32 %v1062
        %vm1724 = vweird.f32 %v1718
        %vm1725 = vmor %vm1723, %vm1724
        %v1726 = vsel %vm1725, %v1718, %v1722
        %v1727 = vand.u32 2147483647, %v1062
        %vm1728 = vcmp.eq.f32.partialorder %v1727, 8.507059e+37
        %v1729 = vand.u32 %v1062, 2147483648
        %v1730 = vor.u32 1.1754944e-38, %v1729
        %v1731 = vsel %vm1728, %v1730, %v1726
        %v1732 = vmul.f32 1.0, %v1731
        %v1733 = vrcp.pop %v1065
        %v1734 = vmul.f32 %v1065, %v1733
        %v1735 = vsub.f32 1.0, %v1734
        %v1736 = vmul.f32 %v1733, %v1735
        %v1737 = vadd.f32 %v1733, %v1736
        %vm1738 = vweird.f32 %v1065
        %vm1739 = vweird.f32 %v1733
        %vm1740 = vmor %vm1738, %vm1739
        %v1741 = vsel %vm1740, %v1733, %v1737
        %v1742 = vand.u32 2147483647, %v1065
        %vm1743 = vcmp.eq.f32.partialorder %v1742, 8.507059e+37
        %v1744 = vand.u32 %v1065, 2147483648
        %v1745 = vor.u32 1.1754944e-38, %v1744
        %v1746 = vsel %vm1743, %v1745, %v1741
        %v1747 = vmul.f32 1.0, %v1746
        %v1748 = vrcp.pop %v1068
        %v1749 = vmul.f32 %v1068, %v1748
        %v1750 = vsub.f32 1.0, %v1749
        %v1751 = vmul.f32 %v1748, %v1750
        %v1752 = vadd.f32 %v1748, %v1751
        %vm1753 = vweird.f32 %v1068
        %vm1754 = vweird.f32 %v1748
        %vm1755 = vmor %vm1753, %vm1754
        %v1756 = vsel %vm1755, %v1748, %v1752
        %v1757 = vand.u32 2147483647, %v1068
        %vm1758 = vcmp.eq.f32.partialorder %v1757, 8.507059e+37
        %v1759 = vand.u32 %v1068, 2147483648
        %v1760 = vor.u32 1.1754944e-38, %v1759
        %v1761 = vsel %vm1758, %v1760, %v1756
        %v1762 = vmul.f32 1.0, %v1761
        %v1763 = vrcp.pop %v1071
        %v1764 = vmul.f32 %v1071, %v1763
        %v1765 = vsub.f32 1.0, %v1764
        %v1766 = vmul.f32 %v1763, %v1765
        %v1767 = vadd.f32 %v1763, %v1766
        %vm1768 = vweird.f32 %v1071
        %vm1769 = vweird.f32 %v1763
        %vm1770 = vmor %vm1768, %vm1769
        %v1771 = vsel %vm1770, %v1763, %v1767
        %v1772 = vand.u32 2147483647, %v1071
        %vm1773 = vcmp.eq.f32.partialorder %v1772, 8.507059e+37
        %v1774 = vand.u32 %v1071, 2147483648
        %v1775 = vor.u32 1.1754944e-38, %v1774
        %v1776 = vsel %vm1773, %v1775, %v1771
        %v1777 = vmul.f32 1.0, %v1776
        %v1778 = vrcp.pop %v1074
        %v1779 = vmul.f32 %v1074, %v1778
        %v1780 = vsub.f32 1.0, %v1779
        %v1781 = vmul.f32 %v1778, %v1780
        %v1782 = vadd.f32 %v1778, %v1781
        %vm1783 = vweird.f32 %v1074
        %vm1784 = vweird.f32 %v1778
        %vm1785 = vmor %vm1783, %vm1784
        %v1786 = vsel %vm1785, %v1778, %v1782
        %v1787 = vand.u32 2147483647, %v1074
        %vm1788 = vcmp.eq.f32.partialorder %v1787, 8.507059e+37
        %v1789 = vand.u32 %v1074, 2147483648
        %v1790 = vor.u32 1.1754944e-38, %v1789
        %v1791 = vsel %vm1788, %v1790, %v1786
        %v1792 = vmul.f32 1.0, %v1791
        %v1793 = vrcp.pop %v1077
        %v1794 = vmul.f32 %v1077, %v1793
        %v1795 = vsub.f32 1.0, %v1794
        %v1796 = vmul.f32 %v1793, %v1795
        %v1797 = vadd.f32 %v1793, %v1796
        %vm1798 = vweird.f32 %v1077
        %vm1799 = vweird.f32 %v1793
        %vm1800 = vmor %vm1798, %vm1799
        %v1801 = vsel %vm1800, %v1793, %v1797
        %v1802 = vand.u32 2147483647, %v1077
        %vm1803 = vcmp.eq.f32.partialorder %v1802, 8.507059e+37
        %v1804 = vand.u32 %v1077, 2147483648
        %v1805 = vor.u32 1.1754944e-38, %v1804
        %v1806 = vsel %vm1803, %v1805, %v1801
        %v1807 = vmul.f32 1.0, %v1806
        %v1808 = vrcp.pop %v1080
        %v1809 = vmul.f32 %v1080, %v1808
        %v1810 = vsub.f32 1.0, %v1809
        %v1811 = vmul.f32 %v1808, %v1810
        %v1812 = vadd.f32 %v1808, %v1811
        %vm1813 = vweird.f32 %v1080
        %vm1814 = vweird.f32 %v1808
        %vm1815 = vmor %vm1813, %vm1814
        %v1816 = vsel %vm1815, %v1808, %v1812
        %v1817 = vand.u32 2147483647, %v1080
        %vm1818 = vcmp.eq.f32.partialorder %v1817, 8.507059e+37
        %v1819 = vand.u32 %v1080, 2147483648
        %v1820 = vor.u32 1.1754944e-38, %v1819
        %v1821 = vsel %vm1818, %v1820, %v1816
        %v1822 = vmul.f32 1.0, %v1821
        %v1823 = vrcp.pop %v1083
        %v1824 = vmul.f32 %v1083, %v1823
        %v1825 = vsub.f32 1.0, %v1824
        %v1826 = vmul.f32 %v1823, %v1825
        %v1827 = vadd.f32 %v1823, %v1826
        %vm1828 = vweird.f32 %v1083
        %vm1829 = vweird.f32 %v1823
        %vm1830 = vmor %vm1828, %vm1829
        %v1831 = vsel %vm1830, %v1823, %v1827
        %v1832 = vand.u32 2147483647, %v1083
        %vm1833 = vcmp.eq.f32.partialorder %v1832, 8.507059e+37
        %v1834 = vand.u32 %v1083, 2147483648
        %v1835 = vor.u32 1.1754944e-38, %v1834
        %v1836 = vsel %vm1833, %v1835, %v1831
        %v1837 = vmul.f32 1.0, %v1836
        %v1838 = vrcp.pop %v1086
        %v1839 = vmul.f32 %v1086, %v1838
        %v1840 = vsub.f32 1.0, %v1839
        %v1841 = vmul.f32 %v1838, %v1840
        %v1842 = vadd.f32 %v1838, %v1841
        %vm1843 = vweird.f32 %v1086
        %vm1844 = vweird.f32 %v1838
        %vm1845 = vmor %vm1843, %vm1844
        %v1846 = vsel %vm1845, %v1838, %v1842
        %v1847 = vand.u32 2147483647, %v1086
        %vm1848 = vcmp.eq.f32.partialorder %v1847, 8.507059e+37
        %v1849 = vand.u32 %v1086, 2147483648
        %v1850 = vor.u32 1.1754944e-38, %v1849
        %v1851 = vsel %vm1848, %v1850, %v1846
        %v1852 = vmul.f32 1.0, %v1851
        %v1853 = vrcp.pop %v1089
        %v1854 = vmul.f32 %v1089, %v1853
        %v1855 = vsub.f32 1.0, %v1854
        %v1856 = vmul.f32 %v1853, %v1855
        %v1857 = vadd.f32 %v1853, %v1856
        %vm1858 = vweird.f32 %v1089
        %vm1859 = vweird.f32 %v1853
        %vm1860 = vmor %vm1858, %vm1859
        %v1861 = vsel %vm1860, %v1853, %v1857
        %v1862 = vand.u32 2147483647, %v1089
        %vm1863 = vcmp.eq.f32.partialorder %v1862, 8.507059e+37
        %v1864 = vand.u32 %v1089, 2147483648
        %v1865 = vor.u32 1.1754944e-38, %v1864
        %v1866 = vsel %vm1863, %v1865, %v1861
        %v1867 = vmul.f32 1.0, %v1866
        %v1868 = vrcp.pop %v1092
        %v1869 = vmul.f32 %v1092, %v1868
        %v1870 = vsub.f32 1.0, %v1869
        %v1871 = vmul.f32 %v1868, %v1870
        %v1872 = vadd.f32 %v1868, %v1871
        %vm1873 = vweird.f32 %v1092
        %vm1874 = vweird.f32 %v1868
        %vm1875 = vmor %vm1873, %vm1874
        %v1876 = vsel %vm1875, %v1868, %v1872
        %v1877 = vand.u32 2147483647, %v1092
        %vm1878 = vcmp.eq.f32.partialorder %v1877, 8.507059e+37
        %v1879 = vand.u32 %v1092, 2147483648
        %v1880 = vor.u32 1.1754944e-38, %v1879
        %v1881 = vsel %vm1878, %v1880, %v1876
        %v1882 = vmul.f32 1.0, %v1881
        %v1883 = vrcp.pop %v1095
        %v1884 = vmul.f32 %v1095, %v1883
        %v1885 = vsub.f32 1.0, %v1884
        %v1886 = vmul.f32 %v1883, %v1885
        %v1887 = vadd.f32 %v1883, %v1886
        %vm1888 = vweird.f32 %v1095
        %vm1889 = vweird.f32 %v1883
        %vm1890 = vmor %vm1888, %vm1889
        %v1891 = vsel %vm1890, %v1883, %v1887
        %v1892 = vand.u32 2147483647, %v1095
        %vm1893 = vcmp.eq.f32.partialorder %v1892, 8.507059e+37
        %v1894 = vand.u32 %v1095, 2147483648
        %v1895 = vor.u32 1.1754944e-38, %v1894
        %v1896 = vsel %vm1893, %v1895, %v1891
        %v1897 = vmul.f32 1.0, %v1896
        %v1898 = vrcp.pop %v1098
        %v1899 = vmul.f32 %v1098, %v1898
        %v1900 = vsub.f32 1.0, %v1899
        %v1901 = vmul.f32 %v1898, %v1900
        %v1902 = vadd.f32 %v1898, %v1901
        %vm1903 = vweird.f32 %v1098
        %vm1904 = vweird.f32 %v1898
        %vm1905 = vmor %vm1903, %vm1904
        %v1906 = vsel %vm1905, %v1898, %v1902
        %v1907 = vand.u32 2147483647, %v1098
        %vm1908 = vcmp.eq.f32.partialorder %v1907, 8.507059e+37
        %v1909 = vand.u32 %v1098, 2147483648
        %v1910 = vor.u32 1.1754944e-38, %v1909
        %v1911 = vsel %vm1908, %v1910, %v1906
        %v1912 = vmul.f32 1.0, %v1911
        %v1913 = vrcp.pop %v1101
        %v1914 = vmul.f32 %v1101, %v1913
        %v1915 = vsub.f32 1.0, %v1914
        %v1916 = vmul.f32 %v1913, %v1915
        %v1917 = vadd.f32 %v1913, %v1916
        %vm1918 = vweird.f32 %v1101
        %vm1919 = vweird.f32 %v1913
        %vm1920 = vmor %vm1918, %vm1919
        %v1921 = vsel %vm1920, %v1913, %v1917
        %v1922 = vand.u32 2147483647, %v1101
        %vm1923 = vcmp.eq.f32.partialorder %v1922, 8.507059e+37
        %v1924 = vand.u32 %v1101, 2147483648
        %v1925 = vor.u32 1.1754944e-38, %v1924
        %v1926 = vsel %vm1923, %v1925, %v1921
        %v1927 = vmul.f32 1.0, %v1926
        %v1928 = vrcp.pop %v1104
        %v1929 = vmul.f32 %v1104, %v1928
        %v1930 = vsub.f32 1.0, %v1929
        %v1931 = vmul.f32 %v1928, %v1930
        %v1932 = vadd.f32 %v1928, %v1931
        %vm1933 = vweird.f32 %v1104
        %vm1934 = vweird.f32 %v1928
        %vm1935 = vmor %vm1933, %vm1934
        %v1936 = vsel %vm1935, %v1928, %v1932
        %v1937 = vand.u32 2147483647, %v1104
        %vm1938 = vcmp.eq.f32.partialorder %v1937, 8.507059e+37
        %v1939 = vand.u32 %v1104, 2147483648
        %v1940 = vor.u32 1.1754944e-38, %v1939
        %v1941 = vsel %vm1938, %v1940, %v1936
        %v1942 = vmul.f32 1.0, %v1941
        %v1943 = vrcp.pop %v1107
        %v1944 = vmul.f32 %v1107, %v1943
        %v1945 = vsub.f32 1.0, %v1944
        %v1946 = vmul.f32 %v1943, %v1945
        %v1947 = vadd.f32 %v1943, %v1946
        %vm1948 = vweird.f32 %v1107
        %vm1949 = vweird.f32 %v1943
        %vm1950 = vmor %vm1948, %vm1949
        %v1951 = vsel %vm1950, %v1943, %v1947
        %v1952 = vand.u32 2147483647, %v1107
        %vm1953 = vcmp.eq.f32.partialorder %v1952, 8.507059e+37
        %v1954 = vand.u32 %v1107, 2147483648
        %v1955 = vor.u32 1.1754944e-38, %v1954
        %v1956 = vsel %vm1953, %v1955, %v1951
        %v1957 = vmul.f32 1.0, %v1956
        %v1958 = vmul.f32 %v1399, %v1492
        %v1959 = vmul.f32 %v1401, %v1507
        %v1960 = vmul.f32 %v1404, %v1522
        %v1961 = vmul.f32 %v1406, %v1537
        %v1962 = vmul.f32 %v1409, %v1552
        %v1963 = vmul.f32 %v1411, %v1567
        %v1964 = vmul.f32 %v1414, %v1582
        %v1965 = vmul.f32 %v1416, %v1597
        %v1966 = vmul.f32 %v1419, %v1612
        %v1967 = vmul.f32 %v1421, %v1627
        %v1968 = vmul.f32 %v1424, %v1642
        %v1969 = vmul.f32 %v1426, %v1657
        %v1970 = vmul.f32 %v1429, %v1672
        %v1971 = vmul.f32 %v1431, %v1687
        %v1972 = vmul.f32 %v1434, %v1702
        %v1973 = vmul.f32 %v1436, %v1717
        %v1974 = vmul.f32 %v1439, %v1732
        %v1975 = vmul.f32 %v1441, %v1747
        %v1976 = vmul.f32 %v1444, %v1762
        %v1977 = vmul.f32 %v1446, %v1777
        %v1978 = vmul.f32 %v1449, %v1792
        %v1979 = vmul.f32 %v1451, %v1807
        %v1980 = vmul.f32 %v1454, %v1822
        %v1981 = vmul.f32 %v1456, %v1837
        %v1982 = vmul.f32 %v1459, %v1852
        %v1983 = vmul.f32 %v1461, %v1867
        %v1984 = vmul.f32 %v1464, %v1882
        %v1985 = vmul.f32 %v1466, %v1897
        %v1986 = vmul.f32 %v1469, %v1912
        %v1987 = vmul.f32 %v1471, %v1927
        %v1988 = vmul.f32 %v1474, %v1942
        %v1989 = vmul.f32 %v1476, %v1957
        %v1990 = vadd.f32 %v1958, %v226
        %v1991 = vadd.f32 %v1959, %v227
        %v1992 = vadd.f32 %v1960, %v228
        %v1993 = vadd.f32 %v1961, %v229
        %v1994 = vadd.f32 %v1962, %v230
        %v1995 = vadd.f32 %v1963, %v231
        %v1996 = vadd.f32 %v1964, %v232
        %v1997 = vadd.f32 %v1965, %v233
        %v1998 = vadd.f32 %v1966, %v234
        %v1999 = vadd.f32 %v1967, %v235
        %v2000 = vadd.f32 %v1968, %v236
        %v2001 = vadd.f32 %v1969, %v237
        %v2002 = vadd.f32 %v1970, %v238
        %v2003 = vadd.f32 %v1971, %v239
        %v2004 = vadd.f32 %v1972, %v240
        %v2005 = vadd.f32 %v1973, %v241
        %v2006 = vadd.f32 %v1974, %v242
        %v2007 = vadd.f32 %v1975, %v243
        %v2008 = vadd.f32 %v1976, %v244
        %v2009 = vadd.f32 %v1977, %v245
        %v2010 = vadd.f32 %v1978, %v246
        %v2011 = vadd.f32 %v1979, %v247
        %v2012 = vadd.f32 %v1980, %v248
        %v2013 = vadd.f32 %v1981, %v249
        %v2014 = vadd.f32 %v1982, %v250
        %v2015 = vadd.f32 %v1983, %v251
        %v2016 = vadd.f32 %v1984, %v252
        %v2017 = vadd.f32 %v1985, %v253
        %v2018 = vadd.f32 %v1986, %v254
        %v2019 = vadd.f32 %v1987, %v255
        %v2020 = vadd.f32 %v1988, %v256
        %v2021 = vadd.f32 %v1989, %v257
        %2022 = vst [vmem:[%s223] sm:$0xff] %v1990
        %2023 = vst [vmem:[%s223 + $0x8] sm:$0xff] %v1991
        %2024 = vst [vmem:[%s223 + $0x10] sm:$0xff] %v1992
        %2025 = vst [vmem:[%s223 + $0x18] sm:$0xff] %v1993
        %2026 = vst [vmem:[%s223 + $0x20] sm:$0xff] %v1994
        %2027 = vst [vmem:[%s223 + $0x28] sm:$0xff] %v1995
        %2028 = vst [vmem:[%s223 + $0x30] sm:$0xff] %v1996
        %2029 = vst [vmem:[%s223 + $0x38] sm:$0xff] %v1997
        %2030 = vst [vmem:[%s223 + $0x40] sm:$0xff] %v1998
        %2031 = vst [vmem:[%s223 + $0x48] sm:$0xff] %v1999
        %2032 = vst [vmem:[%s223 + $0x50] sm:$0xff] %v2000
        %2033 = vst [vmem:[%s223 + $0x58] sm:$0xff] %v2001
        %2034 = vst [vmem:[%s223 + $0x60] sm:$0xff] %v2002
        %2035 = vst [vmem:[%s223 + $0x68] sm:$0xff] %v2003
        %2036 = vst [vmem:[%s223 + $0x70] sm:$0xff] %v2004
        %2037 = vst [vmem:[%s223 + $0x78] sm:$0xff] %v2005
        %2038 = vst [vmem:[%s223 + $0x80] sm:$0xff] %v2006
        %2039 = vst [vmem:[%s223 + $0x88] sm:$0xff] %v2007
        %2040 = vst [vmem:[%s223 + $0x90] sm:$0xff] %v2008
        %2041 = vst [vmem:[%s223 + $0x98] sm:$0xff] %v2009
        %2042 = vst [vmem:[%s223 + $0xa0] sm:$0xff] %v2010
        %2043 = vst [vmem:[%s223 + $0xa8] sm:$0xff] %v2011
        %2044 = vst [vmem:[%s223 + $0xb0] sm:$0xff] %v2012
        %2045 = vst [vmem:[%s223 + $0xb8] sm:$0xff] %v2013
        %2046 = vst [vmem:[%s223 + $0xc0] sm:$0xff] %v2014
        %2047 = vst [vmem:[%s223 + $0xc8] sm:$0xff] %v2015
        %2048 = vst [vmem:[%s223 + $0xd0] sm:$0xff] %v2016
        %2049 = vst [vmem:[%s223 + $0xd8] sm:$0xff] %v2017
        %2050 = vst [vmem:[%s223 + $0xe0] sm:$0xff] %v2018
        %2051 = vst [vmem:[%s223 + $0xe8] sm:$0xff] %v2019
        %2052 = vst [vmem:[%s223 + $0xf0] sm:$0xff] %v2020
        %2053 = vst [vmem:[%s223 + $0xf8] sm:$0xff] %v2021
        %s2054 = sand.u32 %s98, 1
        %s2055 = scalar_lea.sflag [#allocation4], %s2054
        %s2056 = sand.u32 %s98, 1
        %s2057 = smul.addr %s2056, 256
        %s2058 = scalar_lea.vmem [#allocation7], %s2057
        // Predicated region
        $region37: #{tpu_custom_call.1} parent=27 // pred_check
          %p2059 = pneg %p108
        $region38: #{tpu_custom_call.1} parent=27 // pred_check_branch
          %2061 = sbr.rel (%p2059) target = $region40
        $region39: #{tpu_custom_call.1} parent=27 // pred_region
          %s2062 = smul.u32 32, %s27
          %2064 = vsyncadd %s2055, 0
          %s2065 = smul.addr %s26, 32
          %s2066 = sadd.s32 %s2062, %s2065
          %s2067 = smul.addr %s2066, 8
          %s2068 = scalar_lea.hbm %s2, %s2067
          %s2069 = sshll.u32 %s2058, 4
          %s2070 = int_to_ptr.vmem [resolvable:$true] %s2069
          %s2071 = sshll.u32 %s2068, 4
          %s2072 = int_to_ptr.hbm [resolvable:$true] %s2071
          %2077 = dma.vmem_to_hbm [thread:$0]  %s2070, 4096, %s2072, %s2055, 128, 128, 8
        $region40: #{tpu_custom_call.1} parent=27 // pred_fallthru
          _
      $region28: #{tpu_custom_call.1} parent=5 // pred_fallthru
        _
      %p2078 = scmp.le.s32.totalorder 2, %s17
      // Predicated region
      $region41: #{tpu_custom_call.1} parent=5 // pred_check
        %p2079 = pneg %p2078
      $region42: #{tpu_custom_call.1} parent=5 // pred_check_branch
        %2081 = sbr.rel (%p2079) target = $region44
      $region43: #{tpu_custom_call.1} parent=5 // pred_region
        %s2082 = ssub.s32 %s17, 2
        // Predicated region
        $region45: #{tpu_custom_call.1} parent=43 // pred_check
          %p2083 = pneg %p114
        $region46: #{tpu_custom_call.1} parent=43 // pred_check_branch
          %2085 = sbr.rel (%p2083) target = $region48
        $region47: #{tpu_custom_call.1} parent=43 // pred_region
          %s2086 = sand.u32 %s99, 1
          %s2087 = scalar_lea.sflag [#allocation4], %s2086
          %s2088 = sand.u32 %s99, 1
          %s2089 = smul.addr %s2088, 256
          %s2090 = scalar_lea.vmem [#allocation7], %s2089
          %2092 = dma.done %s2087, 4096
        $region48: #{tpu_custom_call.1} parent=43 // pred_fallthru
          _
      $region44: #{tpu_custom_call.1} parent=5 // pred_fallthru
        _
    $region6: #{tpu_custom_call.1} parent=1 // loop_footer
      %s21 = sadd.s32 1, %s17
    $region7: #{tpu_custom_call.1} parent=1 // loop_footer_branch
      %16 = sbr.rel target = $region3
    $region8: #{tpu_custom_call.1} parent=1 // loop_exit
      _
    %2093 = vsyncpa [#allocation3], 1
    %s2094 = scalar_lea.sflag [#allocation3], 1
    %2095 = vsyncpa %s2094, 1
    %2096 = vsyncpa [#allocation6], 1
    %s2097 = scalar_lea.sflag [#allocation6], 1
    %2098 = vsyncpa %s2097, 1
    %2099 = vsyncpa [#allocation4], 1
    %s2100 = scalar_lea.sflag [#allocation4], 1
    %2101 = vsyncpa %s2100, 1

</llo_original>
